<compile_context>
chip_gen: v7x
topology: tpu7x:2x2x1
jax: 0.10.0
libtpu: 0.0.40
codegen_flags: <defaults>
</compile_context>

<pallas_src>
import math

import jax
import jax.numpy as jnp
from jax import lax
from jax.experimental import pallas as pl
from jax.experimental.pallas import tpu as pltpu

HEAD_DIM = 256               # headDimension
NUM_HEADS = 4                # numberHeads
DPH = HEAD_DIM // NUM_HEADS  # dimensionPerHead = 64


def _make_kernel(seq_len, num_heads, dph):
    """Builds the kernel for a fixed per-batch sequence length."""

    def kernel(q_ref, k_ref, v_ref, wq_ref, wk_ref, wv_ref, wo_ref, o_ref,
               q_scr, k_scr, v_scr, comb_scr):
        rows = q_ref.shape[0]
        nb = rows // seq_len  # batch elements packed into this row block

        # ---- 1) Q/K/V projections --------------------------------------
        # One (rows, D) x (D, D) bf16 matmul each, f32 MXU accumulation.
        # Results are staged in f32 VMEM scratch (f32 sublane tile = 8, so the
        # per-batch dynamic row slices below stay tile-aligned) instead of
        # being held live in vregs across the attention loop.
        q_scr[...] = jnp.dot(q_ref[...], wq_ref[...],
                             preferred_element_type=jnp.float32)
        k_scr[...] = jnp.dot(k_ref[...], wk_ref[...],
                             preferred_element_type=jnp.float32)
        v_scr[...] = jnp.dot(v_ref[...], wv_ref[...],
                             preferred_element_type=jnp.float32)

        # ---- 2) per-(batch, head) attention -----------------------------
        def attend(b, carry):
            r0 = pl.multiple_of(b * seq_len, seq_len)
            qb = q_scr[pl.ds(r0, seq_len), :].astype(jnp.bfloat16)
            kb = k_scr[pl.ds(r0, seq_len), :].astype(jnp.bfloat16)
            vb = v_scr[pl.ds(r0, seq_len), :].astype(jnp.bfloat16)

            heads = []
            for h in range(num_heads):  # 4 short static iterations
                c0 = h * dph
                # NOTE: 64-lane column slices at offsets 64/192 cost a little
                # XLU shuffle; acceptable for 4 heads per batch element.
                qh = qb[:, c0:c0 + dph]
                kh = kb[:, c0:c0 + dph]
                vh = vb[:, c0:c0 + dph]

                # scores = qh @ kh^T via transposed-RHS contraction (no XLU
                # transpose); scale already folded into Wq in the wrapper.
                scores = lax.dot_general(
                    qh, kh,
                    dimension_numbers=(((1,), (1,)), ((), ())),
                    preferred_element_type=jnp.float32)           # (S, S) f32

                # TODO(synk): attentionMask / keyPaddingMask branches not
                # implemented (both are None in the reference forward call).
                m = jnp.max(scores, axis=-1, keepdims=True)
                e = jnp.exp(scores - m)                            # (S, S)
                denom = jnp.sum(e, axis=-1, keepdims=True)         # (S, 1)

                # P @ V first (unnormalized), then normalize the small (S,dph)
                # result with an approx reciprocal on the EUP slot.
                pv = jnp.dot(e.astype(jnp.bfloat16), vh,
                             preferred_element_type=jnp.float32)   # (S, dph)
                heads.append(pv * pl.reciprocal(denom, approx=True))

            # Concatenated heads -> lane-dense (S, D) slab in VMEM scratch.
            comb_scr[pl.ds(r0, seq_len), :] = jnp.concatenate(heads, axis=-1)
            return carry

        lax.fori_loop(0, nb, attend, 0, unroll=(nb <= 8))

        # ---- 3) fused output projection ----------------------------------
        # ONE (rows, 256) x (256, 256) matmul per grid step (K=256 fills the
        # MXU); Wo is only read here, never held live across the loops.
        o_ref[...] = jnp.dot(comb_scr[...].astype(jnp.bfloat16), wo_ref[...],
                             preferred_element_type=jnp.float32
                             ).astype(o_ref.dtype)

    return kernel


def multi_head_attention(q, k, v, wq, wk, wv, wo, *, num_heads=NUM_HEADS,
                         batch_tile=None, out_dtype=jnp.bfloat16):
    """q, k, v: (B, S, D) float32. wq/wk/wv/wo: (D, D) torch-layout (out, in)."""
    B, S, D = q.shape
    assert D % num_heads == 0
    dph = D // num_heads
    scale = 1.0 / math.sqrt(dph)

    # Glue: pre-transpose weights to (in, out), fold the softmax scale into Wq,
    # cast once to bf16 for the MXU (f32 accumulation is kept in-kernel).
    wq_t = (wq.T * scale).astype(jnp.bfloat16)
    wk_t = wk.T.astype(jnp.bfloat16)
    wv_t = wv.T.astype(jnp.bfloat16)
    wo_t = wo.T.astype(jnp.bfloat16)

    # Activations as 2-D (B*S, D) bf16: halves DMA bytes and avoids the bf16
    # sublane padding / in-kernel reshape of a (bt, S, D) block.
    q2 = q.astype(jnp.bfloat16).reshape(B * S, D)
    k2 = k.astype(jnp.bfloat16).reshape(B * S, D)
    v2 = v.astype(jnp.bfloat16).reshape(B * S, D)

    if batch_tile is None:
        # ~256 projection rows per grid step feeds the 256-wide MXU (v6e/v7x).
        batch_tile = max(1, min(B, 256 // max(S, 1)))
        if B >= 2:
            # Keep >= 2 "parallel" grid steps so both v7x TensorCores get work.
            batch_tile = min(batch_tile, max(1, B // 2))

    def _legal(bt):
        # bt must divide B; row tile must be a multiple of 16 (bf16 sublane
        # tile) unless the block spans the whole array.
        return B % bt == 0 and ((bt * S) % 16 == 0 or bt == B)

    while batch_tile > 1 and not _legal(batch_tile):
        batch_tile -= 1
    if not _legal(batch_tile):
        batch_tile = B

    rows = batch_tile * S
    grid = (B // batch_tile,)

    act_spec = pl.BlockSpec((rows, D), lambda i: (i, 0))
    w_spec = pl.BlockSpec((D, D), lambda i: (0, 0))

    out = pl.pallas_call(
        _make_kernel(S, num_heads, dph),
        out_shape=jax.ShapeDtypeStruct((B * S, D), out_dtype),
        grid_spec=pltpu.PrefetchScalarGridSpec(
            num_scalar_prefetch=0,
            grid=grid,
            in_specs=[act_spec, act_spec, act_spec,
                      w_spec, w_spec, w_spec, w_spec],
            out_specs=act_spec,
            scratch_shapes=[pltpu.VMEM((rows, D), jnp.float32)] * 4,
        ),
        compiler_params=pltpu.CompilerParams(
            dimension_semantics=("parallel",),
        ),
    )(q2, k2, v2, wq_t, wk_t, wv_t, wo_t)

    return out.reshape(B, S, D)


def mha_reference(q, k, v, wq, wk, wv, wo, num_heads=NUM_HEADS):
    """Pure-JAX f32 reference mirroring the PyTorch module."""
    B, S, D = q.shape
    dph = D // num_heads
    qp = q @ wq.T
    kp = k @ wk.T
    vp = v @ wv.T

    def split(x):
        return x.reshape(B, S, num_heads, dph).transpose(0, 2, 1, 3)

    qh, kh, vh = split(qp), split(kp), split(vp)
    scores = jnp.einsum("bhqd,bhkd->bhqk", qh, kh) / math.sqrt(dph)
    w = jax.nn.softmax(scores, axis=-1)
    out = jnp.einsum("bhqk,bhkd->bhqd", w, vh)
    combined = out.transpose(0, 2, 1, 3).reshape(B, S, D)
    return combined @ wo.T


if __name__ == "__main__":
    def run_case(key, B, S):
        k_q, k_k, k_v, k_wq, k_wk, k_wv, k_wo = jax.random.split(key, 7)
        q = jax.random.normal(k_q, (B, S, HEAD_DIM), dtype=jnp.float32)
        kk = jax.random.normal(k_k, (B, S, HEAD_DIM), dtype=jnp.float32)
        v = jax.random.normal(k_v, (B, S, HEAD_DIM), dtype=jnp.float32)

        # Deterministic synthetic weights (torch nn.Linear layout: (out, in)).
        ws = 1.0 / math.sqrt(HEAD_DIM)
        wq = jax.random.uniform(k_wq, (HEAD_DIM, HEAD_DIM), jnp.float32, -ws, ws)
        wk = jax.random.uniform(k_wk, (HEAD_DIM, HEAD_DIM), jnp.float32, -ws, ws)
        wv = jax.random.uniform(k_wv, (HEAD_DIM, HEAD_DIM), jnp.float32, -ws, ws)
        wo = jax.random.uniform(k_wo, (HEAD_DIM, HEAD_DIM), jnp.float32, -ws, ws)

        out = jax.block_until_ready(multi_head_attention(q, kk, v, wq, wk, wv, wo))
        ref = mha_reference(q, kk, v, wq, wk, wv, wo)
        assert out.shape == (B, S, HEAD_DIM)
        # Tolerance relaxed vs. the f32 reference: bf16 matmul inputs and bf16
        # output (f32 accumulation in-kernel); observed error is ~1e-3.
        assert jnp.allclose(out.astype(jnp.float32), ref, atol=3e-2, rtol=3e-2), \
            f"mismatch vs reference (B={B}, S={S})"

    key = jax.random.PRNGKey(0)
    key1, key2 = jax.random.split(key)
    run_case(key1, B=2, S=8)    # single grid step, 2 batch elements per block
    run_case(key2, B=4, S=16)   # grid=(2,) parallel steps, 2 batches per block

    print("KERNEL_OK")
</pallas_src>

<mosaic_0001>
module attributes {stable_mosaic.version = 11 : i64} {
  func.func @kernel(%arg0: i32, %arg1: memref<16x256xbf16, #tpu.memory_space<vmem>>, %arg2: memref<16x256xbf16, #tpu.memory_space<vmem>>, %arg3: memref<16x256xbf16, #tpu.memory_space<vmem>>, %arg4: memref<256x256xbf16, #tpu.memory_space<vmem>>, %arg5: memref<256x256xbf16, #tpu.memory_space<vmem>>, %arg6: memref<256x256xbf16, #tpu.memory_space<vmem>>, %arg7: memref<256x256xbf16, #tpu.memory_space<vmem>>, %arg8: memref<16x256xbf16, #tpu.memory_space<vmem>>, %arg9: memref<16x256xf32, #tpu.memory_space<vmem>>, %arg10: memref<16x256xf32, #tpu.memory_space<vmem>>, %arg11: memref<16x256xf32, #tpu.memory_space<vmem>>, %arg12: memref<16x256xf32, #tpu.memory_space<vmem>>) attributes {dimension_semantics = [#tpu.dimension_semantics<parallel>], iteration_bounds = array<i64: 1>, scalar_prefetch = 0 : i64, scratch_operands = 4 : i64, tpu.core_type = #tpu.core_type<tc>, window_params = [{transform_indices = @transform_0, window_bounds = array<i64: 16, 256>}, {transform_indices = @transform_1, window_bounds = array<i64: 16, 256>}, {transform_indices = @transform_2, window_bounds = array<i64: 16, 256>}, {pipeline_mode = #tpu.pipeline_mode<synchronous>, transform_indices = @transform_3, window_bounds = array<i64: 256, 256>}, {pipeline_mode = #tpu.pipeline_mode<synchronous>, transform_indices = @transform_4, window_bounds = array<i64: 256, 256>}, {pipeline_mode = #tpu.pipeline_mode<synchronous>, transform_indices = @transform_5, window_bounds = array<i64: 256, 256>}, {pipeline_mode = #tpu.pipeline_mode<synchronous>, transform_indices = @transform_6, window_bounds = array<i64: 256, 256>}, {transform_indices = @transform_7, window_bounds = array<i64: 16, 256>}]} {
    %c0 = arith.constant 0 : index
    %c0_0 = arith.constant 0 : index
    %0 = vector.load %arg1[%c0, %c0_0] : memref<16x256xbf16, #tpu.memory_space<vmem>>, vector<16x256xbf16>
    %c0_1 = arith.constant 0 : index
    %c0_2 = arith.constant 0 : index
    %1 = vector.load %arg4[%c0_1, %c0_2] : memref<256x256xbf16, #tpu.memory_space<vmem>>, vector<256x256xbf16>
    %cst = arith.constant dense<0.000000e+00> : vector<16x256xf32>
    %2 = tpu.matmul %0, %1, %cst {dimension_numbers = #tpu.dot_dimension_numbers<[1], [0], [0], [1], [0, 0, 1, 1], [], []>} : vector<16x256xbf16>, vector<256x256xbf16>, vector<16x256xf32> -> vector<16x256xf32>
    %c0_3 = arith.constant 0 : index
    %c0_4 = arith.constant 0 : index
    %3 = vector.load %arg9[%c0_3, %c0_4] : memref<16x256xf32, #tpu.memory_space<vmem>>, vector<16x256xf32>
    tpu.vector_store %arg9[%c0_3, %c0_4], %2 {strides = array<i32>} : memref<16x256xf32, #tpu.memory_space<vmem>>, vector<16x256xf32>,
    %c0_5 = arith.constant 0 : index
    %c0_6 = arith.constant 0 : index
    %4 = vector.load %arg2[%c0_5, %c0_6] : memref<16x256xbf16, #tpu.memory_space<vmem>>, vector<16x256xbf16>
    %c0_7 = arith.constant 0 : index
    %c0_8 = arith.constant 0 : index
    %5 = vector.load %arg5[%c0_7, %c0_8] : memref<256x256xbf16, #tpu.memory_space<vmem>>, vector<256x256xbf16>
    %cst_9 = arith.constant dense<0.000000e+00> : vector<16x256xf32>
    %6 = tpu.matmul %4, %5, %cst_9 {dimension_numbers = #tpu.dot_dimension_numbers<[1], [0], [0], [1], [0, 0, 1, 1], [], []>} : vector<16x256xbf16>, vector<256x256xbf16>, vector<16x256xf32> -> vector<16x256xf32>
    %c0_10 = arith.constant 0 : index
    %c0_11 = arith.constant 0 : index
    %7 = vector.load %arg10[%c0_10, %c0_11] : memref<16x256xf32, #tpu.memory_space<vmem>>, vector<16x256xf32>
    tpu.vector_store %arg10[%c0_10, %c0_11], %6 {strides = array<i32>} : memref<16x256xf32, #tpu.memory_space<vmem>>, vector<16x256xf32>,
    %c0_12 = arith.constant 0 : index
    %c0_13 = arith.constant 0 : index
    %8 = vector.load %arg3[%c0_12, %c0_13] : memref<16x256xbf16, #tpu.memory_space<vmem>>, vector<16x256xbf16>
    %c0_14 = arith.constant 0 : index
    %c0_15 = arith.constant 0 : index
    %9 = vector.load %arg6[%c0_14, %c0_15] : memref<256x256xbf16, #tpu.memory_space<vmem>>, vector<256x256xbf16>
    %cst_16 = arith.constant dense<0.000000e+00> : vector<16x256xf32>
    %10 = tpu.matmul %8, %9, %cst_16 {dimension_numbers = #tpu.dot_dimension_numbers<[1], [0], [0], [1], [0, 0, 1, 1], [], []>} : vector<16x256xbf16>, vector<256x256xbf16>, vector<16x256xf32> -> vector<16x256xf32>
    %c0_17 = arith.constant 0 : index
    %c0_18 = arith.constant 0 : index
    %11 = vector.load %arg11[%c0_17, %c0_18] : memref<16x256xf32, #tpu.memory_space<vmem>>, vector<16x256xf32>
    tpu.vector_store %arg11[%c0_17, %c0_18], %10 {strides = array<i32>} : memref<16x256xf32, #tpu.memory_space<vmem>>, vector<16x256xf32>,
    %c0_i32 = arith.constant 0 : i32
    %c8_i32 = arith.constant 8 : i32
    %12 = arith.muli %c0_i32, %c8_i32 : i32
    %13 = tpu.assume_multiple %12, 8 : i32
    %14 = arith.index_cast %13 : i32 to index
    %c0_19 = arith.constant 0 : index
    %15 = vector.load %arg9[%14, %c0_19] : memref<16x256xf32, #tpu.memory_space<vmem>>, vector<8x256xf32>
    %16 = arith.truncf %15 : vector<8x256xf32> to vector<8x256xbf16>
    %17 = arith.index_cast %13 : i32 to index
    %c0_20 = arith.constant 0 : index
    %18 = vector.load %arg10[%17, %c0_20] : memref<16x256xf32, #tpu.memory_space<vmem>>, vector<8x256xf32>
    %19 = arith.truncf %18 : vector<8x256xf32> to vector<8x256xbf16>
    %20 = arith.index_cast %13 : i32 to index
    %c0_21 = arith.constant 0 : index
    %21 = vector.load %arg11[%20, %c0_21] : memref<16x256xf32, #tpu.memory_space<vmem>>, vector<8x256xf32>
    %22 = arith.truncf %21 : vector<8x256xf32> to vector<8x256xbf16>
    %23 = vector.extract_strided_slice %16 {offsets = [0, 0], sizes = [8, 64], strides = [1, 1]} : vector<8x256xbf16> to vector<8x64xbf16>
    %24 = vector.extract_strided_slice %19 {offsets = [0, 0], sizes = [8, 64], strides = [1, 1]} : vector<8x256xbf16> to vector<8x64xbf16>
    %25 = vector.extract_strided_slice %22 {offsets = [0, 0], sizes = [8, 64], strides = [1, 1]} : vector<8x256xbf16> to vector<8x64xbf16>
    %cst_22 = arith.constant dense<0.000000e+00> : vector<8x8xf32>
    %26 = tpu.matmul %23, %24, %cst_22 {dimension_numbers = #tpu.dot_dimension_numbers<[1], [1], [0], [0], [0, 0, 1, 0], [], []>} : vector<8x64xbf16>, vector<8x64xbf16>, vector<8x8xf32> -> vector<8x8xf32>
    %cst_23 = arith.constant dense<0xFF800000> : vector<8xf32>
    %27 = vector.multi_reduction <maximumf>, %26, %cst_23 [1] : vector<8x8xf32> to vector<8xf32>
    %28 = vector.shape_cast %27 : vector<8xf32> to vector<8x1xf32>
    %29 = vector.broadcast %28 : vector<8x1xf32> to vector<8x8xf32>
    %30 = arith.subf %26, %29 : vector<8x8xf32>
    %31 = math.exp %30 : vector<8x8xf32>
    %cst_24 = arith.constant dense<0.000000e+00> : vector<8xf32>
    %32 = vector.multi_reduction <add>, %31, %cst_24 [1] : vector<8x8xf32> to vector<8xf32>
    %33 = vector.shape_cast %32 : vector<8xf32> to vector<8x1xf32>
    %34 = arith.truncf %31 : vector<8x8xf32> to vector<8x8xbf16>
    %cst_25 = arith.constant dense<0.000000e+00> : vector<8x64xf32>
    %35 = tpu.matmul %34, %25, %cst_25 {dimension_numbers = #tpu.dot_dimension_numbers<[1], [0], [0], [1], [0, 0, 1, 1], [], []>} : vector<8x8xbf16>, vector<8x64xbf16>, vector<8x64xf32> -> vector<8x64xf32>
    %36 = tpu.reciprocal %33 {approx = true} : vector<8x1xf32> -> vector<8x1xf32>
    %37 = vector.broadcast %36 : vector<8x1xf32> to vector<8x64xf32>
    %38 = arith.mulf %35, %37 : vector<8x64xf32>
    %39 = vector.extract_strided_slice %16 {offsets = [0, 64], sizes = [8, 64], strides = [1, 1]} : vector<8x256xbf16> to vector<8x64xbf16>
    %40 = vector.extract_strided_slice %19 {offsets = [0, 64], sizes = [8, 64], strides = [1, 1]} : vector<8x256xbf16> to vector<8x64xbf16>
    %41 = vector.extract_strided_slice %22 {offsets = [0, 64], sizes = [8, 64], strides = [1, 1]} : vector<8x256xbf16> to vector<8x64xbf16>
    %cst_26 = arith.constant dense<0.000000e+00> : vector<8x8xf32>
    %42 = tpu.matmul %39, %40, %cst_26 {dimension_numbers = #tpu.dot_dimension_numbers<[1], [1], [0], [0], [0, 0, 1, 0], [], []>} : vector<8x64xbf16>, vector<8x64xbf16>, vector<8x8xf32> -> vector<8x8xf32>
    %cst_27 = arith.constant dense<0xFF800000> : vector<8xf32>
    %43 = vector.multi_reduction <maximumf>, %42, %cst_27 [1] : vector<8x8xf32> to vector<8xf32>
    %44 = vector.shape_cast %43 : vector<8xf32> to vector<8x1xf32>
    %45 = vector.broadcast %44 : vector<8x1xf32> to vector<8x8xf32>
    %46 = arith.subf %42, %45 : vector<8x8xf32>
    %47 = math.exp %46 : vector<8x8xf32>
    %cst_28 = arith.constant dense<0.000000e+00> : vector<8xf32>
    %48 = vector.multi_reduction <add>, %47, %cst_28 [1] : vector<8x8xf32> to vector<8xf32>
    %49 = vector.shape_cast %48 : vector<8xf32> to vector<8x1xf32>
    %50 = arith.truncf %47 : vector<8x8xf32> to vector<8x8xbf16>
    %cst_29 = arith.constant dense<0.000000e+00> : vector<8x64xf32>
    %51 = tpu.matmul %50, %41, %cst_29 {dimension_numbers = #tpu.dot_dimension_numbers<[1], [0], [0], [1], [0, 0, 1, 1], [], []>} : vector<8x8xbf16>, vector<8x64xbf16>, vector<8x64xf32> -> vector<8x64xf32>
    %52 = tpu.reciprocal %49 {approx = true} : vector<8x1xf32> -> vector<8x1xf32>
    %53 = vector.broadcast %52 : vector<8x1xf32> to vector<8x64xf32>
    %54 = arith.mulf %51, %53 : vector<8x64xf32>
    %55 = vector.extract_strided_slice %16 {offsets = [0, 128], sizes = [8, 64], strides = [1, 1]} : vector<8x256xbf16> to vector<8x64xbf16>
    %56 = vector.extract_strided_slice %19 {offsets = [0, 128], sizes = [8, 64], strides = [1, 1]} : vector<8x256xbf16> to vector<8x64xbf16>
    %57 = vector.extract_strided_slice %22 {offsets = [0, 128], sizes = [8, 64], strides = [1, 1]} : vector<8x256xbf16> to vector<8x64xbf16>
    %cst_30 = arith.constant dense<0.000000e+00> : vector<8x8xf32>
    %58 = tpu.matmul %55, %56, %cst_30 {dimension_numbers = #tpu.dot_dimension_numbers<[1], [1], [0], [0], [0, 0, 1, 0], [], []>} : vector<8x64xbf16>, vector<8x64xbf16>, vector<8x8xf32> -> vector<8x8xf32>
    %cst_31 = arith.constant dense<0xFF800000> : vector<8xf32>
    %59 = vector.multi_reduction <maximumf>, %58, %cst_31 [1] : vector<8x8xf32> to vector<8xf32>
    %60 = vector.shape_cast %59 : vector<8xf32> to vector<8x1xf32>
    %61 = vector.broadcast %60 : vector<8x1xf32> to vector<8x8xf32>
    %62 = arith.subf %58, %61 : vector<8x8xf32>
    %63 = math.exp %62 : vector<8x8xf32>
    %cst_32 = arith.constant dense<0.000000e+00> : vector<8xf32>
    %64 = vector.multi_reduction <add>, %63, %cst_32 [1] : vector<8x8xf32> to vector<8xf32>
    %65 = vector.shape_cast %64 : vector<8xf32> to vector<8x1xf32>
    %66 = arith.truncf %63 : vector<8x8xf32> to vector<8x8xbf16>
    %cst_33 = arith.constant dense<0.000000e+00> : vector<8x64xf32>
    %67 = tpu.matmul %66, %57, %cst_33 {dimension_numbers = #tpu.dot_dimension_numbers<[1], [0], [0], [1], [0, 0, 1, 1], [], []>} : vector<8x8xbf16>, vector<8x64xbf16>, vector<8x64xf32> -> vector<8x64xf32>
    %68 = tpu.reciprocal %65 {approx = true} : vector<8x1xf32> -> vector<8x1xf32>
    %69 = vector.broadcast %68 : vector<8x1xf32> to vector<8x64xf32>
    %70 = arith.mulf %67, %69 : vector<8x64xf32>
    %71 = vector.extract_strided_slice %16 {offsets = [0, 192], sizes = [8, 64], strides = [1, 1]} : vector<8x256xbf16> to vector<8x64xbf16>
    %72 = vector.extract_strided_slice %19 {offsets = [0, 192], sizes = [8, 64], strides = [1, 1]} : vector<8x256xbf16> to vector<8x64xbf16>
    %73 = vector.extract_strided_slice %22 {offsets = [0, 192], sizes = [8, 64], strides = [1, 1]} : vector<8x256xbf16> to vector<8x64xbf16>
    %cst_34 = arith.constant dense<0.000000e+00> : vector<8x8xf32>
    %74 = tpu.matmul %71, %72, %cst_34 {dimension_numbers = #tpu.dot_dimension_numbers<[1], [1], [0], [0], [0, 0, 1, 0], [], []>} : vector<8x64xbf16>, vector<8x64xbf16>, vector<8x8xf32> -> vector<8x8xf32>
    %cst_35 = arith.constant dense<0xFF800000> : vector<8xf32>
    %75 = vector.multi_reduction <maximumf>, %74, %cst_35 [1] : vector<8x8xf32> to vector<8xf32>
    %76 = vector.shape_cast %75 : vector<8xf32> to vector<8x1xf32>
    %77 = vector.broadcast %76 : vector<8x1xf32> to vector<8x8xf32>
    %78 = arith.subf %74, %77 : vector<8x8xf32>
    %79 = math.exp %78 : vector<8x8xf32>
    %cst_36 = arith.constant dense<0.000000e+00> : vector<8xf32>
    %80 = vector.multi_reduction <add>, %79, %cst_36 [1] : vector<8x8xf32> to vector<8xf32>
    %81 = vector.shape_cast %80 : vector<8xf32> to vector<8x1xf32>
    %82 = arith.truncf %79 : vector<8x8xf32> to vector<8x8xbf16>
    %cst_37 = arith.constant dense<0.000000e+00> : vector<8x64xf32>
    %83 = tpu.matmul %82, %73, %cst_37 {dimension_numbers = #tpu.dot_dimension_numbers<[1], [0], [0], [1], [0, 0, 1, 1], [], []>} : vector<8x8xbf16>, vector<8x64xbf16>, vector<8x64xf32> -> vector<8x64xf32>
    %84 = tpu.reciprocal %81 {approx = true} : vector<8x1xf32> -> vector<8x1xf32>
    %85 = vector.broadcast %84 : vector<8x1xf32> to vector<8x64xf32>
    %86 = arith.mulf %83, %85 : vector<8x64xf32>
    %87 = tpu.concatenate %38, %54, %70, %86 in 1 : vector<8x64xf32>, vector<8x64xf32>, vector<8x64xf32>, vector<8x64xf32> -> vector<8x256xf32>
    %88 = arith.index_cast %13 : i32 to index
    %c0_38 = arith.constant 0 : index
    %89 = vector.load %arg12[%88, %c0_38] : memref<16x256xf32, #tpu.memory_space<vmem>>, vector<8x256xf32>
    tpu.vector_store %arg12[%88, %c0_38], %87 {strides = array<i32>} : memref<16x256xf32, #tpu.memory_space<vmem>>, vector<8x256xf32>,
    %c1_i32 = arith.constant 1 : i32
    %c8_i32_39 = arith.constant 8 : i32
    %90 = arith.muli %c1_i32, %c8_i32_39 : i32
    %91 = tpu.assume_multiple %90, 8 : i32
    %92 = arith.index_cast %91 : i32 to index
    %c0_40 = arith.constant 0 : index
    %93 = vector.load %arg9[%92, %c0_40] : memref<16x256xf32, #tpu.memory_space<vmem>>, vector<8x256xf32>
    %94 = arith.truncf %93 : vector<8x256xf32> to vector<8x256xbf16>
    %95 = arith.index_cast %91 : i32 to index
    %c0_41 = arith.constant 0 : index
    %96 = vector.load %arg10[%95, %c0_41] : memref<16x256xf32, #tpu.memory_space<vmem>>, vector<8x256xf32>
    %97 = arith.truncf %96 : vector<8x256xf32> to vector<8x256xbf16>
    %98 = arith.index_cast %91 : i32 to index
    %c0_42 = arith.constant 0 : index
    %99 = vector.load %arg11[%98, %c0_42] : memref<16x256xf32, #tpu.memory_space<vmem>>, vector<8x256xf32>
    %100 = arith.truncf %99 : vector<8x256xf32> to vector<8x256xbf16>
    %101 = vector.extract_strided_slice %94 {offsets = [0, 0], sizes = [8, 64], strides = [1, 1]} : vector<8x256xbf16> to vector<8x64xbf16>
    %102 = vector.extract_strided_slice %97 {offsets = [0, 0], sizes = [8, 64], strides = [1, 1]} : vector<8x256xbf16> to vector<8x64xbf16>
    %103 = vector.extract_strided_slice %100 {offsets = [0, 0], sizes = [8, 64], strides = [1, 1]} : vector<8x256xbf16> to vector<8x64xbf16>
    %cst_43 = arith.constant dense<0.000000e+00> : vector<8x8xf32>
    %104 = tpu.matmul %101, %102, %cst_43 {dimension_numbers = #tpu.dot_dimension_numbers<[1], [1], [0], [0], [0, 0, 1, 0], [], []>} : vector<8x64xbf16>, vector<8x64xbf16>, vector<8x8xf32> -> vector<8x8xf32>
    %cst_44 = arith.constant dense<0xFF800000> : vector<8xf32>
    %105 = vector.multi_reduction <maximumf>, %104, %cst_44 [1] : vector<8x8xf32> to vector<8xf32>
    %106 = vector.shape_cast %105 : vector<8xf32> to vector<8x1xf32>
    %107 = vector.broadcast %106 : vector<8x1xf32> to vector<8x8xf32>
    %108 = arith.subf %104, %107 : vector<8x8xf32>
    %109 = math.exp %108 : vector<8x8xf32>
    %cst_45 = arith.constant dense<0.000000e+00> : vector<8xf32>
    %110 = vector.multi_reduction <add>, %109, %cst_45 [1] : vector<8x8xf32> to vector<8xf32>
    %111 = vector.shape_cast %110 : vector<8xf32> to vector<8x1xf32>
    %112 = arith.truncf %109 : vector<8x8xf32> to vector<8x8xbf16>
    %cst_46 = arith.constant dense<0.000000e+00> : vector<8x64xf32>
    %113 = tpu.matmul %112, %103, %cst_46 {dimension_numbers = #tpu.dot_dimension_numbers<[1], [0], [0], [1], [0, 0, 1, 1], [], []>} : vector<8x8xbf16>, vector<8x64xbf16>, vector<8x64xf32> -> vector<8x64xf32>
    %114 = tpu.reciprocal %111 {approx = true} : vector<8x1xf32> -> vector<8x1xf32>
    %115 = vector.broadcast %114 : vector<8x1xf32> to vector<8x64xf32>
    %116 = arith.mulf %113, %115 : vector<8x64xf32>
    %117 = vector.extract_strided_slice %94 {offsets = [0, 64], sizes = [8, 64], strides = [1, 1]} : vector<8x256xbf16> to vector<8x64xbf16>
    %118 = vector.extract_strided_slice %97 {offsets = [0, 64], sizes = [8, 64], strides = [1, 1]} : vector<8x256xbf16> to vector<8x64xbf16>
    %119 = vector.extract_strided_slice %100 {offsets = [0, 64], sizes = [8, 64], strides = [1, 1]} : vector<8x256xbf16> to vector<8x64xbf16>
    %cst_47 = arith.constant dense<0.000000e+00> : vector<8x8xf32>
    %120 = tpu.matmul %117, %118, %cst_47 {dimension_numbers = #tpu.dot_dimension_numbers<[1], [1], [0], [0], [0, 0, 1, 0], [], []>} : vector<8x64xbf16>, vector<8x64xbf16>, vector<8x8xf32> -> vector<8x8xf32>
    %cst_48 = arith.constant dense<0xFF800000> : vector<8xf32>
    %121 = vector.multi_reduction <maximumf>, %120, %cst_48 [1] : vector<8x8xf32> to vector<8xf32>
    %122 = vector.shape_cast %121 : vector<8xf32> to vector<8x1xf32>
    %123 = vector.broadcast %122 : vector<8x1xf32> to vector<8x8xf32>
    %124 = arith.subf %120, %123 : vector<8x8xf32>
    %125 = math.exp %124 : vector<8x8xf32>
    %cst_49 = arith.constant dense<0.000000e+00> : vector<8xf32>
    %126 = vector.multi_reduction <add>, %125, %cst_49 [1] : vector<8x8xf32> to vector<8xf32>
    %127 = vector.shape_cast %126 : vector<8xf32> to vector<8x1xf32>
    %128 = arith.truncf %125 : vector<8x8xf32> to vector<8x8xbf16>
    %cst_50 = arith.constant dense<0.000000e+00> : vector<8x64xf32>
    %129 = tpu.matmul %128, %119, %cst_50 {dimension_numbers = #tpu.dot_dimension_numbers<[1], [0], [0], [1], [0, 0, 1, 1], [], []>} : vector<8x8xbf16>, vector<8x64xbf16>, vector<8x64xf32> -> vector<8x64xf32>
    %130 = tpu.reciprocal %127 {approx = true} : vector<8x1xf32> -> vector<8x1xf32>
    %131 = vector.broadcast %130 : vector<8x1xf32> to vector<8x64xf32>
    %132 = arith.mulf %129, %131 : vector<8x64xf32>
    %133 = vector.extract_strided_slice %94 {offsets = [0, 128], sizes = [8, 64], strides = [1, 1]} : vector<8x256xbf16> to vector<8x64xbf16>
    %134 = vector.extract_strided_slice %97 {offsets = [0, 128], sizes = [8, 64], strides = [1, 1]} : vector<8x256xbf16> to vector<8x64xbf16>
    %135 = vector.extract_strided_slice %100 {offsets = [0, 128], sizes = [8, 64], strides = [1, 1]} : vector<8x256xbf16> to vector<8x64xbf16>
    %cst_51 = arith.constant dense<0.000000e+00> : vector<8x8xf32>
    %136 = tpu.matmul %133, %134, %cst_51 {dimension_numbers = #tpu.dot_dimension_numbers<[1], [1], [0], [0], [0, 0, 1, 0], [], []>} : vector<8x64xbf16>, vector<8x64xbf16>, vector<8x8xf32> -> vector<8x8xf32>
    %cst_52 = arith.constant dense<0xFF800000> : vector<8xf32>
    %137 = vector.multi_reduction <maximumf>, %136, %cst_52 [1] : vector<8x8xf32> to vector<8xf32>
    %138 = vector.shape_cast %137 : vector<8xf32> to vector<8x1xf32>
    %139 = vector.broadcast %138 : vector<8x1xf32> to vector<8x8xf32>
    %140 = arith.subf %136, %139 : vector<8x8xf32>
    %141 = math.exp %140 : vector<8x8xf32>
    %cst_53 = arith.constant dense<0.000000e+00> : vector<8xf32>
    %142 = vector.multi_reduction <add>, %141, %cst_53 [1] : vector<8x8xf32> to vector<8xf32>
    %143 = vector.shape_cast %142 : vector<8xf32> to vector<8x1xf32>
    %144 = arith.truncf %141 : vector<8x8xf32> to vector<8x8xbf16>
    %cst_54 = arith.constant dense<0.000000e+00> : vector<8x64xf32>
    %145 = tpu.matmul %144, %135, %cst_54 {dimension_numbers = #tpu.dot_dimension_numbers<[1], [0], [0], [1], [0, 0, 1, 1], [], []>} : vector<8x8xbf16>, vector<8x64xbf16>, vector<8x64xf32> -> vector<8x64xf32>
    %146 = tpu.reciprocal %143 {approx = true} : vector<8x1xf32> -> vector<8x1xf32>
    %147 = vector.broadcast %146 : vector<8x1xf32> to vector<8x64xf32>
    %148 = arith.mulf %145, %147 : vector<8x64xf32>
    %149 = vector.extract_strided_slice %94 {offsets = [0, 192], sizes = [8, 64], strides = [1, 1]} : vector<8x256xbf16> to vector<8x64xbf16>
    %150 = vector.extract_strided_slice %97 {offsets = [0, 192], sizes = [8, 64], strides = [1, 1]} : vector<8x256xbf16> to vector<8x64xbf16>
    %151 = vector.extract_strided_slice %100 {offsets = [0, 192], sizes = [8, 64], strides = [1, 1]} : vector<8x256xbf16> to vector<8x64xbf16>
    %cst_55 = arith.constant dense<0.000000e+00> : vector<8x8xf32>
    %152 = tpu.matmul %149, %150, %cst_55 {dimension_numbers = #tpu.dot_dimension_numbers<[1], [1], [0], [0], [0, 0, 1, 0], [], []>} : vector<8x64xbf16>, vector<8x64xbf16>, vector<8x8xf32> -> vector<8x8xf32>
    %cst_56 = arith.constant dense<0xFF800000> : vector<8xf32>
    %153 = vector.multi_reduction <maximumf>, %152, %cst_56 [1] : vector<8x8xf32> to vector<8xf32>
    %154 = vector.shape_cast %153 : vector<8xf32> to vector<8x1xf32>
    %155 = vector.broadcast %154 : vector<8x1xf32> to vector<8x8xf32>
    %156 = arith.subf %152, %155 : vector<8x8xf32>
    %157 = math.exp %156 : vector<8x8xf32>
    %cst_57 = arith.constant dense<0.000000e+00> : vector<8xf32>
    %158 = vector.multi_reduction <add>, %157, %cst_57 [1] : vector<8x8xf32> to vector<8xf32>
    %159 = vector.shape_cast %158 : vector<8xf32> to vector<8x1xf32>
    %160 = arith.truncf %157 : vector<8x8xf32> to vector<8x8xbf16>
    %cst_58 = arith.constant dense<0.000000e+00> : vector<8x64xf32>
    %161 = tpu.matmul %160, %151, %cst_58 {dimension_numbers = #tpu.dot_dimension_numbers<[1], [0], [0], [1], [0, 0, 1, 1], [], []>} : vector<8x8xbf16>, vector<8x64xbf16>, vector<8x64xf32> -> vector<8x64xf32>
    %162 = tpu.reciprocal %159 {approx = true} : vector<8x1xf32> -> vector<8x1xf32>
    %163 = vector.broadcast %162 : vector<8x1xf32> to vector<8x64xf32>
    %164 = arith.mulf %161, %163 : vector<8x64xf32>
    %165 = tpu.concatenate %116, %132, %148, %164 in 1 : vector<8x64xf32>, vector<8x64xf32>, vector<8x64xf32>, vector<8x64xf32> -> vector<8x256xf32>
    %166 = arith.index_cast %91 : i32 to index
    %c0_59 = arith.constant 0 : index
    %167 = vector.load %arg12[%166, %c0_59] : memref<16x256xf32, #tpu.memory_space<vmem>>, vector<8x256xf32>
    tpu.vector_store %arg12[%166, %c0_59], %165 {strides = array<i32>} : memref<16x256xf32, #tpu.memory_space<vmem>>, vector<8x256xf32>,
    %c2_i32 = arith.constant 2 : i32
    %c0_60 = arith.constant 0 : index
    %c0_61 = arith.constant 0 : index
    %168 = vector.load %arg12[%c0_60, %c0_61] : memref<16x256xf32, #tpu.memory_space<vmem>>, vector<16x256xf32>
    %169 = arith.truncf %168 : vector<16x256xf32> to vector<16x256xbf16>
    %c0_62 = arith.constant 0 : index
    %c0_63 = arith.constant 0 : index
    %170 = vector.load %arg7[%c0_62, %c0_63] : memref<256x256xbf16, #tpu.memory_space<vmem>>, vector<256x256xbf16>
    %cst_64 = arith.constant dense<0.000000e+00> : vector<16x256xf32>
    %171 = tpu.matmul %169, %170, %cst_64 {dimension_numbers = #tpu.dot_dimension_numbers<[1], [0], [0], [1], [0, 0, 1, 1], [], []>} : vector<16x256xbf16>, vector<256x256xbf16>, vector<16x256xf32> -> vector<16x256xf32>
    %172 = arith.truncf %171 : vector<16x256xf32> to vector<16x256xbf16>
    %c0_65 = arith.constant 0 : index
    %c0_66 = arith.constant 0 : index
    %173 = vector.load %arg8[%c0_65, %c0_66] : memref<16x256xbf16, #tpu.memory_space<vmem>>, vector<16x256xbf16>
    tpu.vector_store %arg8[%c0_65, %c0_66], %172 {strides = array<i32>} : memref<16x256xbf16, #tpu.memory_space<vmem>>, vector<16x256xbf16>,
    return
  }
  func.func @transform_0(%arg0: i32) -> (i32, i32) {
    %c0_i32 = arith.constant 0 : i32
    %c0_i32_0 = arith.constant 0 : i32
    return %arg0, %c0_i32 : i32, i32
  }
  func.func @transform_1(%arg0: i32) -> (i32, i32) {
    %c0_i32 = arith.constant 0 : i32
    %c0_i32_0 = arith.constant 0 : i32
    return %arg0, %c0_i32 : i32, i32
  }
  func.func @transform_2(%arg0: i32) -> (i32, i32) {
    %c0_i32 = arith.constant 0 : i32
    %c0_i32_0 = arith.constant 0 : i32
    return %arg0, %c0_i32 : i32, i32
  }
  func.func @transform_3(%arg0: i32) -> (i32, i32) {
    %c0_i32 = arith.constant 0 : i32
    %c0_i32_0 = arith.constant 0 : i32
    %c0_i32_1 = arith.constant 0 : i32
    return %c0_i32, %c0_i32_0 : i32, i32
  }
  func.func @transform_4(%arg0: i32) -> (i32, i32) {
    %c0_i32 = arith.constant 0 : i32
    %c0_i32_0 = arith.constant 0 : i32
    %c0_i32_1 = arith.constant 0 : i32
    return %c0_i32, %c0_i32_0 : i32, i32
  }
  func.func @transform_5(%arg0: i32) -> (i32, i32) {
    %c0_i32 = arith.constant 0 : i32
    %c0_i32_0 = arith.constant 0 : i32
    %c0_i32_1 = arith.constant 0 : i32
    return %c0_i32, %c0_i32_0 : i32, i32
  }
  func.func @transform_6(%arg0: i32) -> (i32, i32) {
    %c0_i32 = arith.constant 0 : i32
    %c0_i32_0 = arith.constant 0 : i32
    %c0_i32_1 = arith.constant 0 : i32
    return %c0_i32, %c0_i32_0 : i32, i32
  }
  func.func @transform_7(%arg0: i32) -> (i32, i32) {
    %c0_i32 = arith.constant 0 : i32
    %c0_i32_0 = arith.constant 0 : i32
    return %arg0, %c0_i32 : i32, i32
  }
}

</mosaic_0001>

<llo_original>
// kernel: tpu_custom_call.1
$region0: #{tpu_custom_call.1}
  #allocation0 [shape = 'u32[]', space=smem, size = 0x4, offset = 0x4, fixed_abs, tag = 'smem constant byte address 0x4 - core index']
  #allocation1 [shape = 'u32[144,128]{1,0:T(1,128)}', space=vmem, size = 0x12000, scoped, tag = 'internal scratch']
  #allocation2 [shape = 'f32[16,256]{1,0:T(8,128)}', space=vmem, size = 0x4000, scoped, tag = 'scratch operand']
  #allocation3 [shape = 'f32[16,256]{1,0:T(8,128)}', space=vmem, size = 0x4000, scoped, tag = 'scratch operand']
  #allocation4 [shape = 'f32[16,256]{1,0:T(8,128)}', space=vmem, size = 0x4000, scoped, tag = 'scratch operand']
  #allocation5 [shape = 'f32[16,256]{1,0:T(8,128)}', space=vmem, size = 0x4000, scoped, tag = 'scratch operand']
  %s0 = inlined_call_operand.hbm [shape: bf16[16,256], index: 0, kind: input, shape index: {}]
  %s1 = inlined_call_operand.hbm [shape: bf16[16,256], index: 1, kind: input, shape index: {}]
  %s2 = inlined_call_operand.hbm [shape: bf16[16,256], index: 2, kind: input, shape index: {}]
  %s3 = inlined_call_operand.hbm [shape: bf16[256,256], index: 3, kind: input, shape index: {}]
  %s4 = inlined_call_operand.hbm [shape: bf16[256,256], index: 4, kind: input, shape index: {}]
  %s5 = inlined_call_operand.hbm [shape: bf16[256,256], index: 5, kind: input, shape index: {}]
  %s6 = inlined_call_operand.hbm [shape: bf16[256,256], index: 6, kind: input, shape index: {}]
  %s7 = inlined_call_operand.hbm [shape: bf16[16,256], index: 7, kind: output, shape index: {}]
  %s8 = sld [smem:[#allocation0]]
  $region66: #{tpu_custom_call.1} parent=0
    _
  %s10 = ssub.s32 1, %s8
  %s11 = scalar_select 0, %s10, %s8
  $region1: #{tpu_custom_call.1} parent=0
    #allocation6 [shape = 'u8[8192]{0}', space=vmem, size = 0x2000, scoped, tag = 'input window, operand 0, single buffered']
    #allocation7 [shape = 's32[1]{0}', space=sflag, size = 0x4, scoped, tag = 'scoped memory for tpu_custom_call.1']
    #allocation8 [shape = 's32[1]{0}', space=sflag, size = 0x4, scoped, tag = 'scoped memory for tpu_custom_call.1']
    #allocation9 [shape = 'u8[8192]{0}', space=vmem, size = 0x2000, scoped, tag = 'input window, operand 1, single buffered']
    #allocation10 [shape = 's32[1]{0}', space=sflag, size = 0x4, scoped, tag = 'scoped memory for tpu_custom_call.1']
    #allocation11 [shape = 'u8[8192]{0}', space=vmem, size = 0x2000, scoped, tag = 'input window, operand 2, single buffered']
    #allocation12 [shape = 'u8[131072]{0}', space=vmem, size = 0x20000, scoped, tag = 'input window, operand 3, single buffered']
    #allocation13 [shape = 's32[1]{0}', space=sflag, size = 0x4, scoped, tag = 'scoped memory for tpu_custom_call.1']
    #allocation14 [shape = 'u8[131072]{0}', space=vmem, size = 0x20000, scoped, tag = 'input window, operand 4, single buffered']
    #allocation15 [shape = 'u8[131072]{0}', space=vmem, size = 0x20000, scoped, tag = 'input window, operand 5, single buffered']
    #allocation16 [shape = 's32[1]{0}', space=sflag, size = 0x4, scoped, tag = 'scoped memory for tpu_custom_call.1']
    #allocation17 [shape = 'u8[131072]{0}', space=vmem, size = 0x20000, scoped, tag = 'input window, operand 6, single buffered']
    #allocation18 [shape = 'u8[8192]{0}', space=vmem, size = 0x2000, scoped, tag = 'output window, operand 0, single buffered']
    %12 = vsyncpa [#allocation7], 0
    %13 = vsyncpa [#allocation10], 0
    %14 = vsyncpa [#allocation13], 0
    %15 = vsyncpa [#allocation16], 0
    %16 = vsyncpa [#allocation8], 0
    // Predicated region
    $region2: #{tpu_custom_call.1} parent=1 // pred_check
      _
    $region3: #{tpu_custom_call.1} parent=1 // pred_check_branch
      %18 = sbr.rel (0) target = $region5
    $region4: #{tpu_custom_call.1} parent=1 // pred_region
      %s20 = ssub.s32 256, 256
      %21 = vsyncadd [#allocation7], %s20
      %s22 = sshll.u32 [#allocation6], 4
      %s23 = int_to_ptr.vmem [resolvable:$true] %s22
      %28 = dma.hbm_to_vmem [thread:$0]  %s0, 256, %s23, [#allocation7], 128, 128, 8
    $region5: #{tpu_custom_call.1} parent=1 // pred_fallthru
      _
    // Predicated region
    $region6: #{tpu_custom_call.1} parent=1 // pred_check
      _
    $region7: #{tpu_custom_call.1} parent=1 // pred_check_branch
      %30 = sbr.rel (0) target = $region9
    $region8: #{tpu_custom_call.1} parent=1 // pred_region
      %s32 = ssub.s32 256, 256
      %33 = vsyncadd [#allocation10], %s32
      %s34 = sshll.u32 [#allocation9], 4
      %s35 = int_to_ptr.vmem [resolvable:$true] %s34
      %40 = dma.hbm_to_vmem [thread:$0]  %s1, 256, %s35, [#allocation10], 128, 128, 8
    $region9: #{tpu_custom_call.1} parent=1 // pred_fallthru
      _
    // Predicated region
    $region10: #{tpu_custom_call.1} parent=1 // pred_check
      _
    $region11: #{tpu_custom_call.1} parent=1 // pred_check_branch
      %42 = sbr.rel (0) target = $region13
    $region12: #{tpu_custom_call.1} parent=1 // pred_region
      %s44 = ssub.s32 256, 256
      %45 = vsyncadd [#allocation10], %s44
      %s46 = sshll.u32 [#allocation11], 4
      %s47 = int_to_ptr.vmem [resolvable:$true] %s46
      %52 = dma.hbm_to_vmem [thread:$0]  %s2, 256, %s47, [#allocation10], 128, 128, 8
    $region13: #{tpu_custom_call.1} parent=1 // pred_fallthru
      _
    // Predicated region
    $region14: #{tpu_custom_call.1} parent=1 // pred_check
      _
    $region15: #{tpu_custom_call.1} parent=1 // pred_check_branch
      %54 = sbr.rel (0) target = $region17
    $region16: #{tpu_custom_call.1} parent=1 // pred_region
      %s56 = ssub.s32 4096, 4096
      %57 = vsyncadd [#allocation13], %s56
      %s58 = sshll.u32 [#allocation12], 4
      %s59 = int_to_ptr.vmem [resolvable:$true] %s58
      %64 = dma.hbm_to_vmem [thread:$0]  %s3, 4096, %s59, [#allocation13], 128, 128, 8
    $region17: #{tpu_custom_call.1} parent=1 // pred_fallthru
      _
    // Predicated region
    $region18: #{tpu_custom_call.1} parent=1 // pred_check
      _
    $region19: #{tpu_custom_call.1} parent=1 // pred_check_branch
      %66 = sbr.rel (0) target = $region21
    $region20: #{tpu_custom_call.1} parent=1 // pred_region
      %s68 = ssub.s32 4096, 4096
      %69 = vsyncadd [#allocation13], %s68
      %s70 = sshll.u32 [#allocation14], 4
      %s71 = int_to_ptr.vmem [resolvable:$true] %s70
      %76 = dma.hbm_to_vmem [thread:$0]  %s4, 4096, %s71, [#allocation13], 128, 128, 8
    $region21: #{tpu_custom_call.1} parent=1 // pred_fallthru
      _
    // Predicated region
    $region22: #{tpu_custom_call.1} parent=1 // pred_check
      _
    $region23: #{tpu_custom_call.1} parent=1 // pred_check_branch
      %78 = sbr.rel (0) target = $region25
    $region24: #{tpu_custom_call.1} parent=1 // pred_region
      %s80 = ssub.s32 4096, 4096
      %81 = vsyncadd [#allocation16], %s80
      %s82 = sshll.u32 [#allocation15], 4
      %s83 = int_to_ptr.vmem [resolvable:$true] %s82
      %88 = dma.hbm_to_vmem [thread:$0]  %s5, 4096, %s83, [#allocation16], 128, 128, 8
    $region25: #{tpu_custom_call.1} parent=1 // pred_fallthru
      _
    // Predicated region
    $region26: #{tpu_custom_call.1} parent=1 // pred_check
      _
    $region27: #{tpu_custom_call.1} parent=1 // pred_check_branch
      %90 = sbr.rel (0) target = $region29
    $region28: #{tpu_custom_call.1} parent=1 // pred_region
      %s92 = ssub.s32 4096, 4096
      %93 = vsyncadd [#allocation16], %s92
      %s94 = sshll.u32 [#allocation17], 4
      %s95 = int_to_ptr.vmem [resolvable:$true] %s94
      %100 = dma.hbm_to_vmem [thread:$0]  %s6, 4096, %s95, [#allocation16], 128, 128, 8
    $region29: #{tpu_custom_call.1} parent=1 // pred_fallthru
      _
    // Predicated region
    $region30: #{tpu_custom_call.1} parent=1 // pred_check
      _
    $region31: #{tpu_custom_call.1} parent=1 // pred_check_branch
      %102 = sbr.rel (0) target = $region33
    $region32: #{tpu_custom_call.1} parent=1 // pred_region
      %103 = dma.done [#allocation7], 256
    $region33: #{tpu_custom_call.1} parent=1 // pred_fallthru
      _
    // Predicated region
    $region34: #{tpu_custom_call.1} parent=1 // pred_check
      _
    $region35: #{tpu_custom_call.1} parent=1 // pred_check_branch
      %105 = sbr.rel (0) target = $region37
    $region36: #{tpu_custom_call.1} parent=1 // pred_region
      %106 = dma.done [#allocation10], 256
    $region37: #{tpu_custom_call.1} parent=1 // pred_fallthru
      _
    // Predicated region
    $region38: #{tpu_custom_call.1} parent=1 // pred_check
      _
    $region39: #{tpu_custom_call.1} parent=1 // pred_check_branch
      %108 = sbr.rel (0) target = $region41
    $region40: #{tpu_custom_call.1} parent=1 // pred_region
      %109 = dma.done [#allocation10], 256
    $region41: #{tpu_custom_call.1} parent=1 // pred_fallthru
      _
    // Predicated region
    $region42: #{tpu_custom_call.1} parent=1 // pred_check
      _
    $region43: #{tpu_custom_call.1} parent=1 // pred_check_branch
      %111 = sbr.rel (0) target = $region45
    $region44: #{tpu_custom_call.1} parent=1 // pred_region
      %112 = dma.done [#allocation13], 4096
    $region45: #{tpu_custom_call.1} parent=1 // pred_fallthru
      _
    // Predicated region
    $region46: #{tpu_custom_call.1} parent=1 // pred_check
      _
    $region47: #{tpu_custom_call.1} parent=1 // pred_check_branch
      %114 = sbr.rel (0) target = $region49
    $region48: #{tpu_custom_call.1} parent=1 // pred_region
      %115 = dma.done [#allocation13], 4096
    $region49: #{tpu_custom_call.1} parent=1 // pred_fallthru
      _
    // Predicated region
    $region50: #{tpu_custom_call.1} parent=1 // pred_check
      _
    $region51: #{tpu_custom_call.1} parent=1 // pred_check_branch
      %117 = sbr.rel (0) target = $region53
    $region52: #{tpu_custom_call.1} parent=1 // pred_region
      %118 = dma.done [#allocation16], 4096
    $region53: #{tpu_custom_call.1} parent=1 // pred_fallthru
      _
    // Predicated region
    $region54: #{tpu_custom_call.1} parent=1 // pred_check
      _
    $region55: #{tpu_custom_call.1} parent=1 // pred_check_branch
      %120 = sbr.rel (0) target = $region57
    $region56: #{tpu_custom_call.1} parent=1 // pred_region
      %121 = dma.done [#allocation16], 4096
    $region57: #{tpu_custom_call.1} parent=1 // pred_fallthru
      _
    %v123 = vld [vmem:[#allocation6] sm:$0xff]
    %v124 = vld [vmem:[#allocation6 + $0x8] sm:$0xff]
    %v125 = vld [vmem:[#allocation12] sm:$0xff]
    %v126 = vld [vmem:[#allocation12 + $0x8] sm:$0xff]
    %v127 = vld [vmem:[#allocation12 + $0x10] sm:$0xff]
    %v128 = vld [vmem:[#allocation12 + $0x18] sm:$0xff]
    %v129 = vld [vmem:[#allocation12 + $0x20] sm:$0xff]
    %v130 = vld [vmem:[#allocation12 + $0x28] sm:$0xff]
    %v131 = vld [vmem:[#allocation12 + $0x30] sm:$0xff]
    %v132 = vld [vmem:[#allocation12 + $0x38] sm:$0xff]
    %v133 = vld [vmem:[#allocation12 + $0x40] sm:$0xff]
    %v134 = vld [vmem:[#allocation12 + $0x48] sm:$0xff]
    %v135 = vld [vmem:[#allocation12 + $0x50] sm:$0xff]
    %v136 = vld [vmem:[#allocation12 + $0x58] sm:$0xff]
    %v137 = vld [vmem:[#allocation12 + $0x60] sm:$0xff]
    %v138 = vld [vmem:[#allocation12 + $0x68] sm:$0xff]
    %v139 = vld [vmem:[#allocation12 + $0x70] sm:$0xff]
    %v140 = vld [vmem:[#allocation12 + $0x78] sm:$0xff]
    %v141 = vld [vmem:[#allocation12 + $0x80] sm:$0xff]
    %v142 = vld [vmem:[#allocation12 + $0x88] sm:$0xff]
    %v143 = vld [vmem:[#allocation12 + $0x90] sm:$0xff]
    %v144 = vld [vmem:[#allocation12 + $0x98] sm:$0xff]
    %v145 = vld [vmem:[#allocation12 + $0xa0] sm:$0xff]
    %v146 = vld [vmem:[#allocation12 + $0xa8] sm:$0xff]
    %v147 = vld [vmem:[#allocation12 + $0xb0] sm:$0xff]
    %v148 = vld [vmem:[#allocation12 + $0xb8] sm:$0xff]
    %v149 = vld [vmem:[#allocation12 + $0xc0] sm:$0xff]
    %v150 = vld [vmem:[#allocation12 + $0xc8] sm:$0xff]
    %v151 = vld [vmem:[#allocation12 + $0xd0] sm:$0xff]
    %v152 = vld [vmem:[#allocation12 + $0xd8] sm:$0xff]
    %v153 = vld [vmem:[#allocation12 + $0xe0] sm:$0xff]
    %v154 = vld [vmem:[#allocation12 + $0xe8] sm:$0xff]
    %v155 = vld [vmem:[#allocation12 + $0xf0] sm:$0xff]
    %v156 = vld [vmem:[#allocation12 + $0xf8] sm:$0xff]
    %v159 = vunpack.c.l.b16 %v123
    %v160 = vunpack.c.h.b16 %v123
    %v161 = vunpack.c.l.b16 %v124
    %v162 = vunpack.c.h.b16 %v124
    %v163 = vpack.c.b16 %v161, %v159
    %v164 = vpack.c.b16 %v162, %v160
    %v199 = vunpack.c.l.b16 %v125
    %v200 = vunpack.c.h.b16 %v125
    %v201 = vunpack.c.l.b16 %v126
    %v202 = vunpack.c.h.b16 %v126
    %v203 = vunpack.c.l.b16 %v127
    %v204 = vunpack.c.h.b16 %v127
    %v205 = vunpack.c.l.b16 %v128
    %v206 = vunpack.c.h.b16 %v128
    %v207 = vunpack.c.l.b16 %v129
    %v208 = vunpack.c.h.b16 %v129
    %v209 = vunpack.c.l.b16 %v130
    %v210 = vunpack.c.h.b16 %v130
    %v211 = vunpack.c.l.b16 %v131
    %v212 = vunpack.c.h.b16 %v131
    %v213 = vunpack.c.l.b16 %v132
    %v214 = vunpack.c.h.b16 %v132
    %v215 = vunpack.c.l.b16 %v133
    %v216 = vunpack.c.h.b16 %v133
    %v217 = vunpack.c.l.b16 %v134
    %v218 = vunpack.c.h.b16 %v134
    %v219 = vunpack.c.l.b16 %v135
    %v220 = vunpack.c.h.b16 %v135
    %v221 = vunpack.c.l.b16 %v136
    %v222 = vunpack.c.h.b16 %v136
    %v223 = vunpack.c.l.b16 %v137
    %v224 = vunpack.c.h.b16 %v137
    %v225 = vunpack.c.l.b16 %v138
    %v226 = vunpack.c.h.b16 %v138
    %v227 = vunpack.c.l.b16 %v139
    %v228 = vunpack.c.h.b16 %v139
    %v229 = vunpack.c.l.b16 %v140
    %v230 = vunpack.c.h.b16 %v140
    %v231 = vunpack.c.l.b16 %v141
    %v232 = vunpack.c.h.b16 %v141
    %v233 = vunpack.c.l.b16 %v142
    %v234 = vunpack.c.h.b16 %v142
    %v235 = vunpack.c.l.b16 %v143
    %v236 = vunpack.c.h.b16 %v143
    %v237 = vunpack.c.l.b16 %v144
    %v238 = vunpack.c.h.b16 %v144
    %v239 = vunpack.c.l.b16 %v145
    %v240 = vunpack.c.h.b16 %v145
    %v241 = vunpack.c.l.b16 %v146
    %v242 = vunpack.c.h.b16 %v146
    %v243 = vunpack.c.l.b16 %v147
    %v244 = vunpack.c.h.b16 %v147
    %v245 = vunpack.c.l.b16 %v148
    %v246 = vunpack.c.h.b16 %v148
    %v247 = vunpack.c.l.b16 %v149
    %v248 = vunpack.c.h.b16 %v149
    %v249 = vunpack.c.l.b16 %v150
    %v250 = vunpack.c.h.b16 %v150
    %v251 = vunpack.c.l.b16 %v151
    %v252 = vunpack.c.h.b16 %v151
    %v253 = vunpack.c.l.b16 %v152
    %v254 = vunpack.c.h.b16 %v152
    %v255 = vunpack.c.l.b16 %v153
    %v256 = vunpack.c.h.b16 %v153
    %v257 = vunpack.c.l.b16 %v154
    %v258 = vunpack.c.h.b16 %v154
    %v259 = vunpack.c.l.b16 %v155
    %v260 = vunpack.c.h.b16 %v155
    %v261 = vunpack.c.l.b16 %v156
    %v262 = vunpack.c.h.b16 %v156
    %v263 = vpack.c.b16 %v201, %v199
    %v264 = vpack.c.b16 %v202, %v200
    %v265 = vpack.c.b16 %v205, %v203
    %v266 = vpack.c.b16 %v206, %v204
    %v267 = vpack.c.b16 %v209, %v207
    %v268 = vpack.c.b16 %v210, %v208
    %v269 = vpack.c.b16 %v213, %v211
    %v270 = vpack.c.b16 %v214, %v212
    %v271 = vpack.c.b16 %v217, %v215
    %v272 = vpack.c.b16 %v218, %v216
    %v273 = vpack.c.b16 %v221, %v219
    %v274 = vpack.c.b16 %v222, %v220
    %v275 = vpack.c.b16 %v225, %v223
    %v276 = vpack.c.b16 %v226, %v224
    %v277 = vpack.c.b16 %v229, %v227
    %v278 = vpack.c.b16 %v230, %v228
    %v279 = vpack.c.b16 %v233, %v231
    %v280 = vpack.c.b16 %v234, %v232
    %v281 = vpack.c.b16 %v237, %v235
    %v282 = vpack.c.b16 %v238, %v236
    %v283 = vpack.c.b16 %v241, %v239
    %v284 = vpack.c.b16 %v242, %v240
    %v285 = vpack.c.b16 %v245, %v243
    %v286 = vpack.c.b16 %v246, %v244
    %v287 = vpack.c.b16 %v249, %v247
    %v288 = vpack.c.b16 %v250, %v248
    %v289 = vpack.c.b16 %v253, %v251
    %v290 = vpack.c.b16 %v254, %v252
    %v291 = vpack.c.b16 %v257, %v255
    %v292 = vpack.c.b16 %v258, %v256
    %v293 = vpack.c.b16 %v261, %v259
    %v294 = vpack.c.b16 %v262, %v260
    %327 = vmatprep.subr.bf16.mxu0 %v264
    %328 = vmatpush1.bf16.msra.mxu0 %v263
    %329 = vmatprep.subr.bf16.mxu0 %v266
    %330 = vmatpush1.bf16.msra.mxu0 %v265
    %331 = vmatprep.subr.bf16.mxu0 %v268
    %332 = vmatpush1.bf16.msra.mxu0 %v267
    %333 = vmatprep.subr.bf16.mxu0 %v270
    %334 = vmatpush1.bf16.msra.mxu0 %v269
    %335 = vmatprep.subr.bf16.mxu0 %v272
    %336 = vmatpush1.bf16.msra.mxu0 %v271
    %337 = vmatprep.subr.bf16.mxu0 %v274
    %338 = vmatpush1.bf16.msra.mxu0 %v273
    %339 = vmatprep.subr.bf16.mxu0 %v276
    %340 = vmatpush1.bf16.msra.mxu0 %v275
    %341 = vmatprep.subr.bf16.mxu0 %v278
    %342 = vmatpush1.bf16.msra.mxu0 %v277
    %343 = vmatprep.subr.bf16.mxu0 %v280
    %344 = vmatpush1.bf16.msra.mxu0 %v279
    %345 = vmatprep.subr.bf16.mxu0 %v282
    %346 = vmatpush1.bf16.msra.mxu0 %v281
    %347 = vmatprep.subr.bf16.mxu0 %v284
    %348 = vmatpush1.bf16.msra.mxu0 %v283
    %349 = vmatprep.subr.bf16.mxu0 %v286
    %350 = vmatpush1.bf16.msra.mxu0 %v285
    %351 = vmatprep.subr.bf16.mxu0 %v288
    %352 = vmatpush1.bf16.msra.mxu0 %v287
    %353 = vmatprep.subr.bf16.mxu0 %v290
    %354 = vmatpush1.bf16.msra.mxu0 %v289
    %355 = vmatprep.subr.bf16.mxu0 %v292
    %356 = vmatpush1.bf16.msra.mxu0 %v291
    %357 = vmatprep.subr.bf16.mxu0 %v294
    %358 = vmatpush1.bf16.msra.mxu0 %v293
    %359 = vmatprep.mubr.bf16.mxu0 %v164
    %360 = vmatmul.mubr.bf16.gmra.mrb[0].mxu0 %v163
    %v361 = vpop.f32.mrb[0].mxu0
    %v362 = vadd.f32 0.0, %v361
    %v363 = vpop.f32.mrb[0].mxu0
    %v364 = vadd.f32 0.0, %v363
    %v365 = vpop.f32.mrb[0].mxu0
    %v366 = vadd.f32 0.0, %v365
    %v367 = vpop.f32.mrb[0].mxu0
    %v368 = vadd.f32 0.0, %v367
    %369 = vdwg.mxu0
    %370 = vst [vmem:[#allocation2] sm:$0xff] %v362
    %371 = vst [vmem:[#allocation2 + $0x8] sm:$0xff] %v364
    %372 = vst [vmem:[#allocation2 + $0x10] sm:$0xff] %v366
    %373 = vst [vmem:[#allocation2 + $0x18] sm:$0xff] %v368
    %v374 = vld [vmem:[#allocation9] sm:$0xff]
    %v375 = vld [vmem:[#allocation9 + $0x8] sm:$0xff]
    %v376 = vld [vmem:[#allocation14] sm:$0xff]
    %v377 = vld [vmem:[#allocation14 + $0x8] sm:$0xff]
    %v378 = vld [vmem:[#allocation14 + $0x10] sm:$0xff]
    %v379 = vld [vmem:[#allocation14 + $0x18] sm:$0xff]
    %v380 = vld [vmem:[#allocation14 + $0x20] sm:$0xff]
    %v381 = vld [vmem:[#allocation14 + $0x28] sm:$0xff]
    %v382 = vld [vmem:[#allocation14 + $0x30] sm:$0xff]
    %v383 = vld [vmem:[#allocation14 + $0x38] sm:$0xff]
    %v384 = vld [vmem:[#allocation14 + $0x40] sm:$0xff]
    %v385 = vld [vmem:[#allocation14 + $0x48] sm:$0xff]
    %v386 = vld [vmem:[#allocation14 + $0x50] sm:$0xff]
    %v387 = vld [vmem:[#allocation14 + $0x58] sm:$0xff]
    %v388 = vld [vmem:[#allocation14 + $0x60] sm:$0xff]
    %v389 = vld [vmem:[#allocation14 + $0x68] sm:$0xff]
    %v390 = vld [vmem:[#allocation14 + $0x70] sm:$0xff]
    %v391 = vld [vmem:[#allocation14 + $0x78] sm:$0xff]
    %v392 = vld [vmem:[#allocation14 + $0x80] sm:$0xff]
    %v393 = vld [vmem:[#allocation14 + $0x88] sm:$0xff]
    %v394 = vld [vmem:[#allocation14 + $0x90] sm:$0xff]
    %v395 = vld [vmem:[#allocation14 + $0x98] sm:$0xff]
    %v396 = vld [vmem:[#allocation14 + $0xa0] sm:$0xff]
    %v397 = vld [vmem:[#allocation14 + $0xa8] sm:$0xff]
    %v398 = vld [vmem:[#allocation14 + $0xb0] sm:$0xff]
    %v399 = vld [vmem:[#allocation14 + $0xb8] sm:$0xff]
    %v400 = vld [vmem:[#allocation14 + $0xc0] sm:$0xff]
    %v401 = vld [vmem:[#allocation14 + $0xc8] sm:$0xff]
    %v402 = vld [vmem:[#allocation14 + $0xd0] sm:$0xff]
    %v403 = vld [vmem:[#allocation14 + $0xd8] sm:$0xff]
    %v404 = vld [vmem:[#allocation14 + $0xe0] sm:$0xff]
    %v405 = vld [vmem:[#allocation14 + $0xe8] sm:$0xff]
    %v406 = vld [vmem:[#allocation14 + $0xf0] sm:$0xff]
    %v407 = vld [vmem:[#allocation14 + $0xf8] sm:$0xff]
    %v410 = vunpack.c.l.b16 %v374
    %v411 = vunpack.c.h.b16 %v374
    %v412 = vunpack.c.l.b16 %v375
    %v413 = vunpack.c.h.b16 %v375
    %v414 = vpack.c.b16 %v412, %v410
    %v415 = vpack.c.b16 %v413, %v411
    %v450 = vunpack.c.l.b16 %v376
    %v451 = vunpack.c.h.b16 %v376
    %v452 = vunpack.c.l.b16 %v377
    %v453 = vunpack.c.h.b16 %v377
    %v454 = vunpack.c.l.b16 %v378
    %v455 = vunpack.c.h.b16 %v378
    %v456 = vunpack.c.l.b16 %v379
    %v457 = vunpack.c.h.b16 %v379
    %v458 = vunpack.c.l.b16 %v380
    %v459 = vunpack.c.h.b16 %v380
    %v460 = vunpack.c.l.b16 %v381
    %v461 = vunpack.c.h.b16 %v381
    %v462 = vunpack.c.l.b16 %v382
    %v463 = vunpack.c.h.b16 %v382
    %v464 = vunpack.c.l.b16 %v383
    %v465 = vunpack.c.h.b16 %v383
    %v466 = vunpack.c.l.b16 %v384
    %v467 = vunpack.c.h.b16 %v384
    %v468 = vunpack.c.l.b16 %v385
    %v469 = vunpack.c.h.b16 %v385
    %v470 = vunpack.c.l.b16 %v386
    %v471 = vunpack.c.h.b16 %v386
    %v472 = vunpack.c.l.b16 %v387
    %v473 = vunpack.c.h.b16 %v387
    %v474 = vunpack.c.l.b16 %v388
    %v475 = vunpack.c.h.b16 %v388
    %v476 = vunpack.c.l.b16 %v389
    %v477 = vunpack.c.h.b16 %v389
    %v478 = vunpack.c.l.b16 %v390
    %v479 = vunpack.c.h.b16 %v390
    %v480 = vunpack.c.l.b16 %v391
    %v481 = vunpack.c.h.b16 %v391
    %v482 = vunpack.c.l.b16 %v392
    %v483 = vunpack.c.h.b16 %v392
    %v484 = vunpack.c.l.b16 %v393
    %v485 = vunpack.c.h.b16 %v393
    %v486 = vunpack.c.l.b16 %v394
    %v487 = vunpack.c.h.b16 %v394
    %v488 = vunpack.c.l.b16 %v395
    %v489 = vunpack.c.h.b16 %v395
    %v490 = vunpack.c.l.b16 %v396
    %v491 = vunpack.c.h.b16 %v396
    %v492 = vunpack.c.l.b16 %v397
    %v493 = vunpack.c.h.b16 %v397
    %v494 = vunpack.c.l.b16 %v398
    %v495 = vunpack.c.h.b16 %v398
    %v496 = vunpack.c.l.b16 %v399
    %v497 = vunpack.c.h.b16 %v399
    %v498 = vunpack.c.l.b16 %v400
    %v499 = vunpack.c.h.b16 %v400
    %v500 = vunpack.c.l.b16 %v401
    %v501 = vunpack.c.h.b16 %v401
    %v502 = vunpack.c.l.b16 %v402
    %v503 = vunpack.c.h.b16 %v402
    %v504 = vunpack.c.l.b16 %v403
    %v505 = vunpack.c.h.b16 %v403
    %v506 = vunpack.c.l.b16 %v404
    %v507 = vunpack.c.h.b16 %v404
    %v508 = vunpack.c.l.b16 %v405
    %v509 = vunpack.c.h.b16 %v405
    %v510 = vunpack.c.l.b16 %v406
    %v511 = vunpack.c.h.b16 %v406
    %v512 = vunpack.c.l.b16 %v407
    %v513 = vunpack.c.h.b16 %v407
    %v514 = vpack.c.b16 %v452, %v450
    %v515 = vpack.c.b16 %v453, %v451
    %v516 = vpack.c.b16 %v456, %v454
    %v517 = vpack.c.b16 %v457, %v455
    %v518 = vpack.c.b16 %v460, %v458
    %v519 = vpack.c.b16 %v461, %v459
    %v520 = vpack.c.b16 %v464, %v462
    %v521 = vpack.c.b16 %v465, %v463
    %v522 = vpack.c.b16 %v468, %v466
    %v523 = vpack.c.b16 %v469, %v467
    %v524 = vpack.c.b16 %v472, %v470
    %v525 = vpack.c.b16 %v473, %v471
    %v526 = vpack.c.b16 %v476, %v474
    %v527 = vpack.c.b16 %v477, %v475
    %v528 = vpack.c.b16 %v480, %v478
    %v529 = vpack.c.b16 %v481, %v479
    %v530 = vpack.c.b16 %v484, %v482
    %v531 = vpack.c.b16 %v485, %v483
    %v532 = vpack.c.b16 %v488, %v486
    %v533 = vpack.c.b16 %v489, %v487
    %v534 = vpack.c.b16 %v492, %v490
    %v535 = vpack.c.b16 %v493, %v491
    %v536 = vpack.c.b16 %v496, %v494
    %v537 = vpack.c.b16 %v497, %v495
    %v538 = vpack.c.b16 %v500, %v498
    %v539 = vpack.c.b16 %v501, %v499
    %v540 = vpack.c.b16 %v504, %v502
    %v541 = vpack.c.b16 %v505, %v503
    %v542 = vpack.c.b16 %v508, %v506
    %v543 = vpack.c.b16 %v509, %v507
    %v544 = vpack.c.b16 %v512, %v510
    %v545 = vpack.c.b16 %v513, %v511
    %578 = vmatprep.subr.bf16.mxu0 %v515
    %579 = vmatpush1.bf16.msra.mxu0 %v514
    %580 = vmatprep.subr.bf16.mxu0 %v517
    %581 = vmatpush1.bf16.msra.mxu0 %v516
    %582 = vmatprep.subr.bf16.mxu0 %v519
    %583 = vmatpush1.bf16.msra.mxu0 %v518
    %584 = vmatprep.subr.bf16.mxu0 %v521
    %585 = vmatpush1.bf16.msra.mxu0 %v520
    %586 = vmatprep.subr.bf16.mxu0 %v523
    %587 = vmatpush1.bf16.msra.mxu0 %v522
    %588 = vmatprep.subr.bf16.mxu0 %v525
    %589 = vmatpush1.bf16.msra.mxu0 %v524
    %590 = vmatprep.subr.bf16.mxu0 %v527
    %591 = vmatpush1.bf16.msra.mxu0 %v526
    %592 = vmatprep.subr.bf16.mxu0 %v529
    %593 = vmatpush1.bf16.msra.mxu0 %v528
    %594 = vmatprep.subr.bf16.mxu0 %v531
    %595 = vmatpush1.bf16.msra.mxu0 %v530
    %596 = vmatprep.subr.bf16.mxu0 %v533
    %597 = vmatpush1.bf16.msra.mxu0 %v532
    %598 = vmatprep.subr.bf16.mxu0 %v535
    %599 = vmatpush1.bf16.msra.mxu0 %v534
    %600 = vmatprep.subr.bf16.mxu0 %v537
    %601 = vmatpush1.bf16.msra.mxu0 %v536
    %602 = vmatprep.subr.bf16.mxu0 %v539
    %603 = vmatpush1.bf16.msra.mxu0 %v538
    %604 = vmatprep.subr.bf16.mxu0 %v541
    %605 = vmatpush1.bf16.msra.mxu0 %v540
    %606 = vmatprep.subr.bf16.mxu0 %v543
    %607 = vmatpush1.bf16.msra.mxu0 %v542
    %608 = vmatprep.subr.bf16.mxu0 %v545
    %609 = vmatpush1.bf16.msra.mxu0 %v544
    %610 = vmatprep.mubr.bf16.mxu0 %v415
    %611 = vmatmul.mubr.bf16.gmra.mrb[0].mxu0 %v414
    %v612 = vpop.f32.mrb[0].mxu0
    %v613 = vadd.f32 0.0, %v612
    %v614 = vpop.f32.mrb[0].mxu0
    %v615 = vadd.f32 0.0, %v614
    %v616 = vpop.f32.mrb[0].mxu0
    %v617 = vadd.f32 0.0, %v616
    %v618 = vpop.f32.mrb[0].mxu0
    %v619 = vadd.f32 0.0, %v618
    %620 = vdwg.mxu0
    %621 = vst [vmem:[#allocation3] sm:$0xff] %v613
    %622 = vst [vmem:[#allocation3 + $0x8] sm:$0xff] %v615
    %623 = vst [vmem:[#allocation3 + $0x10] sm:$0xff] %v617
    %624 = vst [vmem:[#allocation3 + $0x18] sm:$0xff] %v619
    %v625 = vld [vmem:[#allocation11] sm:$0xff]
    %v626 = vld [vmem:[#allocation11 + $0x8] sm:$0xff]
    %v627 = vld [vmem:[#allocation15] sm:$0xff]
    %v628 = vld [vmem:[#allocation15 + $0x8] sm:$0xff]
    %v629 = vld [vmem:[#allocation15 + $0x10] sm:$0xff]
    %v630 = vld [vmem:[#allocation15 + $0x18] sm:$0xff]
    %v631 = vld [vmem:[#allocation15 + $0x20] sm:$0xff]
    %v632 = vld [vmem:[#allocation15 + $0x28] sm:$0xff]
    %v633 = vld [vmem:[#allocation15 + $0x30] sm:$0xff]
    %v634 = vld [vmem:[#allocation15 + $0x38] sm:$0xff]
    %v635 = vld [vmem:[#allocation15 + $0x40] sm:$0xff]
    %v636 = vld [vmem:[#allocation15 + $0x48] sm:$0xff]
    %v637 = vld [vmem:[#allocation15 + $0x50] sm:$0xff]
    %v638 = vld [vmem:[#allocation15 + $0x58] sm:$0xff]
    %v639 = vld [vmem:[#allocation15 + $0x60] sm:$0xff]
    %v640 = vld [vmem:[#allocation15 + $0x68] sm:$0xff]
    %v641 = vld [vmem:[#allocation15 + $0x70] sm:$0xff]
    %v642 = vld [vmem:[#allocation15 + $0x78] sm:$0xff]
    %v643 = vld [vmem:[#allocation15 + $0x80] sm:$0xff]
    %v644 = vld [vmem:[#allocation15 + $0x88] sm:$0xff]
    %v645 = vld [vmem:[#allocation15 + $0x90] sm:$0xff]
    %v646 = vld [vmem:[#allocation15 + $0x98] sm:$0xff]
    %v647 = vld [vmem:[#allocation15 + $0xa0] sm:$0xff]
    %v648 = vld [vmem:[#allocation15 + $0xa8] sm:$0xff]
    %v649 = vld [vmem:[#allocation15 + $0xb0] sm:$0xff]
    %v650 = vld [vmem:[#allocation15 + $0xb8] sm:$0xff]
    %v651 = vld [vmem:[#allocation15 + $0xc0] sm:$0xff]
    %v652 = vld [vmem:[#allocation15 + $0xc8] sm:$0xff]
    %v653 = vld [vmem:[#allocation15 + $0xd0] sm:$0xff]
    %v654 = vld [vmem:[#allocation15 + $0xd8] sm:$0xff]
    %v655 = vld [vmem:[#allocation15 + $0xe0] sm:$0xff]
    %v656 = vld [vmem:[#allocation15 + $0xe8] sm:$0xff]
    %v657 = vld [vmem:[#allocation15 + $0xf0] sm:$0xff]
    %v658 = vld [vmem:[#allocation15 + $0xf8] sm:$0xff]
    %v661 = vunpack.c.l.b16 %v625
    %v662 = vunpack.c.h.b16 %v625
    %v663 = vunpack.c.l.b16 %v626
    %v664 = vunpack.c.h.b16 %v626
    %v665 = vpack.c.b16 %v663, %v661
    %v666 = vpack.c.b16 %v664, %v662
    %v701 = vunpack.c.l.b16 %v627
    %v702 = vunpack.c.h.b16 %v627
    %v703 = vunpack.c.l.b16 %v628
    %v704 = vunpack.c.h.b16 %v628
    %v705 = vunpack.c.l.b16 %v629
    %v706 = vunpack.c.h.b16 %v629
    %v707 = vunpack.c.l.b16 %v630
    %v708 = vunpack.c.h.b16 %v630
    %v709 = vunpack.c.l.b16 %v631
    %v710 = vunpack.c.h.b16 %v631
    %v711 = vunpack.c.l.b16 %v632
    %v712 = vunpack.c.h.b16 %v632
    %v713 = vunpack.c.l.b16 %v633
    %v714 = vunpack.c.h.b16 %v633
    %v715 = vunpack.c.l.b16 %v634
    %v716 = vunpack.c.h.b16 %v634
    %v717 = vunpack.c.l.b16 %v635
    %v718 = vunpack.c.h.b16 %v635
    %v719 = vunpack.c.l.b16 %v636
    %v720 = vunpack.c.h.b16 %v636
    %v721 = vunpack.c.l.b16 %v637
    %v722 = vunpack.c.h.b16 %v637
    %v723 = vunpack.c.l.b16 %v638
    %v724 = vunpack.c.h.b16 %v638
    %v725 = vunpack.c.l.b16 %v639
    %v726 = vunpack.c.h.b16 %v639
    %v727 = vunpack.c.l.b16 %v640
    %v728 = vunpack.c.h.b16 %v640
    %v729 = vunpack.c.l.b16 %v641
    %v730 = vunpack.c.h.b16 %v641
    %v731 = vunpack.c.l.b16 %v642
    %v732 = vunpack.c.h.b16 %v642
    %v733 = vunpack.c.l.b16 %v643
    %v734 = vunpack.c.h.b16 %v643
    %v735 = vunpack.c.l.b16 %v644
    %v736 = vunpack.c.h.b16 %v644
    %v737 = vunpack.c.l.b16 %v645
    %v738 = vunpack.c.h.b16 %v645
    %v739 = vunpack.c.l.b16 %v646
    %v740 = vunpack.c.h.b16 %v646
    %v741 = vunpack.c.l.b16 %v647
    %v742 = vunpack.c.h.b16 %v647
    %v743 = vunpack.c.l.b16 %v648
    %v744 = vunpack.c.h.b16 %v648
    %v745 = vunpack.c.l.b16 %v649
    %v746 = vunpack.c.h.b16 %v649
    %v747 = vunpack.c.l.b16 %v650
    %v748 = vunpack.c.h.b16 %v650
    %v749 = vunpack.c.l.b16 %v651
    %v750 = vunpack.c.h.b16 %v651
    %v751 = vunpack.c.l.b16 %v652
    %v752 = vunpack.c.h.b16 %v652
    %v753 = vunpack.c.l.b16 %v653
    %v754 = vunpack.c.h.b16 %v653
    %v755 = vunpack.c.l.b16 %v654
    %v756 = vunpack.c.h.b16 %v654
    %v757 = vunpack.c.l.b16 %v655
    %v758 = vunpack.c.h.b16 %v655
    %v759 = vunpack.c.l.b16 %v656
    %v760 = vunpack.c.h.b16 %v656
    %v761 = vunpack.c.l.b16 %v657
    %v762 = vunpack.c.h.b16 %v657
    %v763 = vunpack.c.l.b16 %v658
    %v764 = vunpack.c.h.b16 %v658
    %v765 = vpack.c.b16 %v703, %v701
    %v766 = vpack.c.b16 %v704, %v702
    %v767 = vpack.c.b16 %v707, %v705
    %v768 = vpack.c.b16 %v708, %v706
    %v769 = vpack.c.b16 %v711, %v709
    %v770 = vpack.c.b16 %v712, %v710
    %v771 = vpack.c.b16 %v715, %v713
    %v772 = vpack.c.b16 %v716, %v714
    %v773 = vpack.c.b16 %v719, %v717
    %v774 = vpack.c.b16 %v720, %v718
    %v775 = vpack.c.b16 %v723, %v721
    %v776 = vpack.c.b16 %v724, %v722
    %v777 = vpack.c.b16 %v727, %v725
    %v778 = vpack.c.b16 %v728, %v726
    %v779 = vpack.c.b16 %v731, %v729
    %v780 = vpack.c.b16 %v732, %v730
    %v781 = vpack.c.b16 %v735, %v733
    %v782 = vpack.c.b16 %v736, %v734
    %v783 = vpack.c.b16 %v739, %v737
    %v784 = vpack.c.b16 %v740, %v738
    %v785 = vpack.c.b16 %v743, %v741
    %v786 = vpack.c.b16 %v744, %v742
    %v787 = vpack.c.b16 %v747, %v745
    %v788 = vpack.c.b16 %v748, %v746
    %v789 = vpack.c.b16 %v751, %v749
    %v790 = vpack.c.b16 %v752, %v750
    %v791 = vpack.c.b16 %v755, %v753
    %v792 = vpack.c.b16 %v756, %v754
    %v793 = vpack.c.b16 %v759, %v757
    %v794 = vpack.c.b16 %v760, %v758
    %v795 = vpack.c.b16 %v763, %v761
    %v796 = vpack.c.b16 %v764, %v762
    %829 = vmatprep.subr.bf16.mxu0 %v766
    %830 = vmatpush1.bf16.msra.mxu0 %v765
    %831 = vmatprep.subr.bf16.mxu0 %v768
    %832 = vmatpush1.bf16.msra.mxu0 %v767
    %833 = vmatprep.subr.bf16.mxu0 %v770
    %834 = vmatpush1.bf16.msra.mxu0 %v769
    %835 = vmatprep.subr.bf16.mxu0 %v772
    %836 = vmatpush1.bf16.msra.mxu0 %v771
    %837 = vmatprep.subr.bf16.mxu0 %v774
    %838 = vmatpush1.bf16.msra.mxu0 %v773
    %839 = vmatprep.subr.bf16.mxu0 %v776
    %840 = vmatpush1.bf16.msra.mxu0 %v775
    %841 = vmatprep.subr.bf16.mxu0 %v778
    %842 = vmatpush1.bf16.msra.mxu0 %v777
    %843 = vmatprep.subr.bf16.mxu0 %v780
    %844 = vmatpush1.bf16.msra.mxu0 %v779
    %845 = vmatprep.subr.bf16.mxu0 %v782
    %846 = vmatpush1.bf16.msra.mxu0 %v781
    %847 = vmatprep.subr.bf16.mxu0 %v784
    %848 = vmatpush1.bf16.msra.mxu0 %v783
    %849 = vmatprep.subr.bf16.mxu0 %v786
    %850 = vmatpush1.bf16.msra.mxu0 %v785
    %851 = vmatprep.subr.bf16.mxu0 %v788
    %852 = vmatpush1.bf16.msra.mxu0 %v787
    %853 = vmatprep.subr.bf16.mxu0 %v790
    %854 = vmatpush1.bf16.msra.mxu0 %v789
    %855 = vmatprep.subr.bf16.mxu0 %v792
    %856 = vmatpush1.bf16.msra.mxu0 %v791
    %857 = vmatprep.subr.bf16.mxu0 %v794
    %858 = vmatpush1.bf16.msra.mxu0 %v793
    %859 = vmatprep.subr.bf16.mxu0 %v796
    %860 = vmatpush1.bf16.msra.mxu0 %v795
    %861 = vmatprep.mubr.bf16.mxu0 %v666
    %862 = vmatmul.mubr.bf16.gmra.mrb[0].mxu0 %v665
    %v863 = vpop.f32.mrb[0].mxu0
    %v864 = vadd.f32 0.0, %v863
    %v865 = vpop.f32.mrb[0].mxu0
    %v866 = vadd.f32 0.0, %v865
    %v867 = vpop.f32.mrb[0].mxu0
    %v868 = vadd.f32 0.0, %v867
    %v869 = vpop.f32.mrb[0].mxu0
    %v870 = vadd.f32 0.0, %v869
    %871 = vdwg.mxu0
    %872 = vst [vmem:[#allocation4] sm:$0xff] %v864
    %873 = vst [vmem:[#allocation4 + $0x8] sm:$0xff] %v866
    %874 = vst [vmem:[#allocation4 + $0x10] sm:$0xff] %v868
    %875 = vst [vmem:[#allocation4 + $0x18] sm:$0xff] %v870
    %s876 = smul.u32 0, 2
    %s877 = smul.addr %s876, 8
    %s878 = scalar_lea.vmem [#allocation2], %s877
    %v879 = vld [vmem:[%s878] sm:$0xff]
    %v880 = vld [vmem:[%s878 + $0x8] sm:$0xff]
    %v881 = vpack.c.bf16 %v879, %v879
    %v882 = vpack.c.bf16 %v880, %v880
    %s883 = smul.addr %s876, 8
    %s884 = scalar_lea.vmem [#allocation3], %s883
    %v885 = vld [vmem:[%s884] sm:$0xff]
    %v886 = vld [vmem:[%s884 + $0x8] sm:$0xff]
    %v887 = vpack.c.bf16 %v885, %v885
    %v888 = vpack.c.bf16 %v886, %v886
    %s889 = smul.addr %s876, 8
    %s890 = scalar_lea.vmem [#allocation4], %s889
    %v891 = vld [vmem:[%s890] sm:$0xff]
    %v892 = vld [vmem:[%s890 + $0x8] sm:$0xff]
    %v893 = vpack.c.bf16 %v891, %v891
    %v894 = vpack.c.bf16 %v892, %v892
    %vm895 = vcmask 523264
    %v897 = vsel %vm895, %v881, 0
    %v900 = vsel %vm895, %v887, 0
    %902 = vmatprep.subr.bf16.mxu0 0
    %903 = vmatpush1.bf16.xpose.msra.mxu0 %v900
    %904 = vmatprep.subr.bf16.mxu0 0
    %905 = vmatpush1.bf16.xpose.msra.mxu0 0
    %906 = vmatprep.subr.bf16.mxu0 0
    %907 = vmatpush1.bf16.xpose.msra.mxu0 0
    %908 = vmatprep.subr.bf16.mxu0 0
    %909 = vmatpush1.bf16.xpose.msra.mxu0 0
    %910 = vmatprep.subr.bf16.mxu0 0
    %911 = vmatpush1.bf16.xpose.msra.mxu0 0
    %912 = vmatprep.subr.bf16.mxu0 0
    %913 = vmatpush1.bf16.xpose.msra.mxu0 0
    %914 = vmatprep.subr.bf16.mxu0 0
    %915 = vmatpush1.bf16.xpose.msra.mxu0 0
    %916 = vmatprep.subr.bf16.mxu0 0
    %917 = vmatpush1.bf16.xpose.msra.mxu0 0
    %918 = vmatprep.subr.bf16.mxu0 0
    %919 = vmatpush1.bf16.xpose.msra.mxu0 0
    %920 = vmatprep.subr.bf16.mxu0 0
    %921 = vmatpush1.bf16.xpose.msra.mxu0 0
    %922 = vmatprep.subr.bf16.mxu0 0
    %923 = vmatpush1.bf16.xpose.msra.mxu0 0
    %924 = vmatprep.subr.bf16.mxu0 0
    %925 = vmatpush1.bf16.xpose.msra.mxu0 0
    %926 = vmatprep.subr.bf16.mxu0 0
    %927 = vmatpush1.bf16.xpose.msra.mxu0 0
    %928 = vmatprep.subr.bf16.mxu0 0
    %929 = vmatpush1.bf16.xpose.msra.mxu0 0
    %930 = vmatprep.subr.bf16.mxu0 0
    %931 = vmatpush1.bf16.xpose.msra.mxu0 0
    %932 = vmatprep.subr.bf16.mxu0 0
    %933 = vmatpush1.bf16.xpose.msra.mxu0 0
    %934 = vmatprep.mubr.bf16.mxu0 0
    %935 = vmatmul.mubr.bf16.gmra.mrb[0].mxu0 %v897
    %v936 = vpop.f32.mrb[0].mxu0
    %v937 = vadd.f32 0.0, %v936
    %v938 = vpop.f32.mrb[0].mxu0
    %v939 = vpop.f32.mrb[0].mxu0
    %v940 = vpop.f32.mrb[0].mxu0
    %941 = vdwg.mxu0
    %vm942 = vcmask 64512
    %v943 = vsel %vm942, %v937, -inf
    %944 = vmax.xlane.f32.xlu0 %v943
    %v945 = vpop.xlane.xlu0 %944
    %v946 = vsub.f32 %v937, %v945
    %v947 = vmul.f32 %v946, 1.442695
    %v948 = vpow.pop %v947
    %v949 = vsel %vm942, %v948, 0.0
    %950 = vadd.xlane.f32.xlu0 %v949
    %v951 = vpop.xlane.xlu0 %950
    %v952 = vpack.c.bf16 %v948, %v948
    %v954 = vsel %vm942, %v952, 0
    %vm956 = vcmask 1043456
    %v958 = vsel %vm956, %v893, 0
    %960 = vmatprep.subr.bf16.mxu0 0
    %961 = vmatpush1.bf16.msra.mxu0 %v958
    %962 = vmatprep.subr.bf16.mxu0 0
    %963 = vmatpush1.bf16.msra.mxu0 0
    %964 = vmatprep.subr.bf16.mxu0 0
    %965 = vmatpush1.bf16.msra.mxu0 0
    %966 = vmatprep.subr.bf16.mxu0 0
    %967 = vmatpush1.bf16.msra.mxu0 0
    %968 = vmatprep.subr.bf16.mxu0 0
    %969 = vmatpush1.bf16.msra.mxu0 0
    %970 = vmatprep.subr.bf16.mxu0 0
    %971 = vmatpush1.bf16.msra.mxu0 0
    %972 = vmatprep.subr.bf16.mxu0 0
    %973 = vmatpush1.bf16.msra.mxu0 0
    %974 = vmatprep.subr.bf16.mxu0 0
    %975 = vmatpush1.bf16.msra.mxu0 0
    %976 = vmatprep.subr.bf16.mxu0 0
    %977 = vmatpush1.bf16.msra.mxu0 0
    %978 = vmatprep.subr.bf16.mxu0 0
    %979 = vmatpush1.bf16.msra.mxu0 0
    %980 = vmatprep.subr.bf16.mxu0 0
    %981 = vmatpush1.bf16.msra.mxu0 0
    %982 = vmatprep.subr.bf16.mxu0 0
    %983 = vmatpush1.bf16.msra.mxu0 0
    %984 = vmatprep.subr.bf16.mxu0 0
    %985 = vmatpush1.bf16.msra.mxu0 0
    %986 = vmatprep.subr.bf16.mxu0 0
    %987 = vmatpush1.bf16.msra.mxu0 0
    %988 = vmatprep.subr.bf16.mxu0 0
    %989 = vmatpush1.bf16.msra.mxu0 0
    %990 = vmatprep.subr.bf16.mxu0 0
    %991 = vmatpush1.bf16.msra.mxu0 0
    %992 = vmatprep.mubr.bf16.mxu0 0
    %993 = vmatmul.mubr.bf16.gmra.mrb[0].mxu0 %v954
    %v994 = vpop.f32.mrb[0].mxu0
    %v995 = vadd.f32 0.0, %v994
    %v996 = vpop.f32.mrb[0].mxu0
    %v997 = vpop.f32.mrb[0].mxu0
    %v998 = vpop.f32.mrb[0].mxu0
    %999 = vdwg.mxu0
    %v1000 = vrcp.pop %v951
    %v1001 = vmul.f32 %v995, %v1000
    %1003 = vrot.lane.b32.xlu0 %v881, 64
    %v1004 = vpop.permute.xlu0 %1003
    %1006 = vrot.lane.b32.xlu0 %v887, 64
    %v1007 = vpop.permute.xlu0 %1006
    %v1009 = vsel %vm895, %v1004, 0
    %v1012 = vsel %vm895, %v1007, 0
    %1014 = vmatprep.subr.bf16.mxu0 0
    %1015 = vmatpush1.bf16.xpose.msra.mxu0 %v1012
    %1016 = vmatprep.subr.bf16.mxu0 0
    %1017 = vmatpush1.bf16.xpose.msra.mxu0 0
    %1018 = vmatprep.subr.bf16.mxu0 0
    %1019 = vmatpush1.bf16.xpose.msra.mxu0 0
    %1020 = vmatprep.subr.bf16.mxu0 0
    %1021 = vmatpush1.bf16.xpose.msra.mxu0 0
    %1022 = vmatprep.subr.bf16.mxu0 0
    %1023 = vmatpush1.bf16.xpose.msra.mxu0 0
    %1024 = vmatprep.subr.bf16.mxu0 0
    %1025 = vmatpush1.bf16.xpose.msra.mxu0 0
    %1026 = vmatprep.subr.bf16.mxu0 0
    %1027 = vmatpush1.bf16.xpose.msra.mxu0 0
    %1028 = vmatprep.subr.bf16.mxu0 0
    %1029 = vmatpush1.bf16.xpose.msra.mxu0 0
    %1030 = vmatprep.subr.bf16.mxu0 0
    %1031 = vmatpush1.bf16.xpose.msra.mxu0 0
    %1032 = vmatprep.subr.bf16.mxu0 0
    %1033 = vmatpush1.bf16.xpose.msra.mxu0 0
    %1034 = vmatprep.subr.bf16.mxu0 0
    %1035 = vmatpush1.bf16.xpose.msra.mxu0 0
    %1036 = vmatprep.subr.bf16.mxu0 0
    %1037 = vmatpush1.bf16.xpose.msra.mxu0 0
    %1038 = vmatprep.subr.bf16.mxu0 0
    %1039 = vmatpush1.bf16.xpose.msra.mxu0 0
    %1040 = vmatprep.subr.bf16.mxu0 0
    %1041 = vmatpush1.bf16.xpose.msra.mxu0 0
    %1042 = vmatprep.subr.bf16.mxu0 0
    %1043 = vmatpush1.bf16.xpose.msra.mxu0 0
    %1044 = vmatprep.subr.bf16.mxu0 0
    %1045 = vmatpush1.bf16.xpose.msra.mxu0 0
    %1046 = vmatprep.mubr.bf16.mxu0 0
    %1047 = vmatmul.mubr.bf16.gmra.mrb[0].mxu0 %v1009
    %v1048 = vpop.f32.mrb[0].mxu0
    %v1049 = vadd.f32 0.0, %v1048
    %v1050 = vpop.f32.mrb[0].mxu0
    %v1051 = vpop.f32.mrb[0].mxu0
    %v1052 = vpop.f32.mrb[0].mxu0
    %1053 = vdwg.mxu0
    %v1054 = vsel %vm942, %v1049, -inf
    %1055 = vmax.xlane.f32.xlu0 %v1054
    %v1056 = vpop.xlane.xlu0 %1055
    %v1057 = vsub.f32 %v1049, %v1056
    %v1058 = vmul.f32 %v1057, 1.442695
    %v1059 = vpow.pop %v1058
    %v1060 = vsel %vm942, %v1059, 0.0
    %1061 = vadd.xlane.f32.xlu0 %v1060
    %v1062 = vpop.xlane.xlu0 %1061
    %v1063 = vpack.c.bf16 %v1059, %v1059
    %1065 = vrot.lane.b32.xlu0 %v893, 64
    %v1066 = vpop.permute.xlu0 %1065
    %v1068 = vsel %vm942, %v1063, 0
    %v1071 = vsel %vm956, %v1066, 0
    %1073 = vmatprep.subr.bf16.mxu0 0
    %1074 = vmatpush1.bf16.msra.mxu0 %v1071
    %1075 = vmatprep.subr.bf16.mxu0 0
    %1076 = vmatpush1.bf16.msra.mxu0 0
    %1077 = vmatprep.subr.bf16.mxu0 0
    %1078 = vmatpush1.bf16.msra.mxu0 0
    %1079 = vmatprep.subr.bf16.mxu0 0
    %1080 = vmatpush1.bf16.msra.mxu0 0
    %1081 = vmatprep.subr.bf16.mxu0 0
    %1082 = vmatpush1.bf16.msra.mxu0 0
    %1083 = vmatprep.subr.bf16.mxu0 0
    %1084 = vmatpush1.bf16.msra.mxu0 0
    %1085 = vmatprep.subr.bf16.mxu0 0
    %1086 = vmatpush1.bf16.msra.mxu0 0
    %1087 = vmatprep.subr.bf16.mxu0 0
    %1088 = vmatpush1.bf16.msra.mxu0 0
    %1089 = vmatprep.subr.bf16.mxu0 0
    %1090 = vmatpush1.bf16.msra.mxu0 0
    %1091 = vmatprep.subr.bf16.mxu0 0
    %1092 = vmatpush1.bf16.msra.mxu0 0
    %1093 = vmatprep.subr.bf16.mxu0 0
    %1094 = vmatpush1.bf16.msra.mxu0 0
    %1095 = vmatprep.subr.bf16.mxu0 0
    %1096 = vmatpush1.bf16.msra.mxu0 0
    %1097 = vmatprep.subr.bf16.mxu0 0
    %1098 = vmatpush1.bf16.msra.mxu0 0
    %1099 = vmatprep.subr.bf16.mxu0 0
    %1100 = vmatpush1.bf16.msra.mxu0 0
    %1101 = vmatprep.subr.bf16.mxu0 0
    %1102 = vmatpush1.bf16.msra.mxu0 0
    %1103 = vmatprep.subr.bf16.mxu0 0
    %1104 = vmatpush1.bf16.msra.mxu0 0
    %1105 = vmatprep.mubr.bf16.mxu0 0
    %1106 = vmatmul.mubr.bf16.gmra.mrb[0].mxu0 %v1068
    %v1107 = vpop.f32.mrb[0].mxu0
    %v1108 = vadd.f32 0.0, %v1107
    %v1109 = vpop.f32.mrb[0].mxu0
    %v1110 = vpop.f32.mrb[0].mxu0
    %v1111 = vpop.f32.mrb[0].mxu0
    %1112 = vdwg.mxu0
    %v1113 = vrcp.pop %v1062
    %v1114 = vmul.f32 %v1108, %v1113
    %v1116 = vsel %vm895, %v882, 0
    %v1119 = vsel %vm895, %v888, 0
    %1121 = vmatprep.subr.bf16.mxu0 0
    %1122 = vmatpush1.bf16.xpose.msra.mxu0 %v1119
    %1123 = vmatprep.subr.bf16.mxu0 0
    %1124 = vmatpush1.bf16.xpose.msra.mxu0 0
    %1125 = vmatprep.subr.bf16.mxu0 0
    %1126 = vmatpush1.bf16.xpose.msra.mxu0 0
    %1127 = vmatprep.subr.bf16.mxu0 0
    %1128 = vmatpush1.bf16.xpose.msra.mxu0 0
    %1129 = vmatprep.subr.bf16.mxu0 0
    %1130 = vmatpush1.bf16.xpose.msra.mxu0 0
    %1131 = vmatprep.subr.bf16.mxu0 0
    %1132 = vmatpush1.bf16.xpose.msra.mxu0 0
    %1133 = vmatprep.subr.bf16.mxu0 0
    %1134 = vmatpush1.bf16.xpose.msra.mxu0 0
    %1135 = vmatprep.subr.bf16.mxu0 0
    %1136 = vmatpush1.bf16.xpose.msra.mxu0 0
    %1137 = vmatprep.subr.bf16.mxu0 0
    %1138 = vmatpush1.bf16.xpose.msra.mxu0 0
    %1139 = vmatprep.subr.bf16.mxu0 0
    %1140 = vmatpush1.bf16.xpose.msra.mxu0 0
    %1141 = vmatprep.subr.bf16.mxu0 0
    %1142 = vmatpush1.bf16.xpose.msra.mxu0 0
    %1143 = vmatprep.subr.bf16.mxu0 0
    %1144 = vmatpush1.bf16.xpose.msra.mxu0 0
    %1145 = vmatprep.subr.bf16.mxu0 0
    %1146 = vmatpush1.bf16.xpose.msra.mxu0 0
    %1147 = vmatprep.subr.bf16.mxu0 0
    %1148 = vmatpush1.bf16.xpose.msra.mxu0 0
    %1149 = vmatprep.subr.bf16.mxu0 0
    %1150 = vmatpush1.bf16.xpose.msra.mxu0 0
    %1151 = vmatprep.subr.bf16.mxu0 0
    %1152 = vmatpush1.bf16.xpose.msra.mxu0 0
    %1153 = vmatprep.mubr.bf16.mxu0 0
    %1154 = vmatmul.mubr.bf16.gmra.mrb[0].mxu0 %v1116
    %v1155 = vpop.f32.mrb[0].mxu0
    %v1156 = vadd.f32 0.0, %v1155
    %v1157 = vpop.f32.mrb[0].mxu0
    %v1158 = vpop.f32.mrb[0].mxu0
    %v1159 = vpop.f32.mrb[0].mxu0
    %1160 = vdwg.mxu0
    %v1161 = vsel %vm942, %v1156, -inf
    %1162 = vmax.xlane.f32.xlu0 %v1161
    %v1163 = vpop.xlane.xlu0 %1162
    %v1164 = vsub.f32 %v1156, %v1163
    %v1165 = vmul.f32 %v1164, 1.442695
    %v1166 = vpow.pop %v1165
    %v1167 = vsel %vm942, %v1166, 0.0
    %1168 = vadd.xlane.f32.xlu0 %v1167
    %v1169 = vpop.xlane.xlu0 %1168
    %v1170 = vpack.c.bf16 %v1166, %v1166
    %v1172 = vsel %vm942, %v1170, 0
    %v1175 = vsel %vm956, %v894, 0
    %1177 = vmatprep.subr.bf16.mxu0 0
    %1178 = vmatpush1.bf16.msra.mxu0 %v1175
    %1179 = vmatprep.subr.bf16.mxu0 0
    %1180 = vmatpush1.bf16.msra.mxu0 0
    %1181 = vmatprep.subr.bf16.mxu0 0
    %1182 = vmatpush1.bf16.msra.mxu0 0
    %1183 = vmatprep.subr.bf16.mxu0 0
    %1184 = vmatpush1.bf16.msra.mxu0 0
    %1185 = vmatprep.subr.bf16.mxu0 0
    %1186 = vmatpush1.bf16.msra.mxu0 0
    %1187 = vmatprep.subr.bf16.mxu0 0
    %1188 = vmatpush1.bf16.msra.mxu0 0
    %1189 = vmatprep.subr.bf16.mxu0 0
    %1190 = vmatpush1.bf16.msra.mxu0 0
    %1191 = vmatprep.subr.bf16.mxu0 0
    %1192 = vmatpush1.bf16.msra.mxu0 0
    %1193 = vmatprep.subr.bf16.mxu0 0
    %1194 = vmatpush1.bf16.msra.mxu0 0
    %1195 = vmatprep.subr.bf16.mxu0 0
    %1196 = vmatpush1.bf16.msra.mxu0 0
    %1197 = vmatprep.subr.bf16.mxu0 0
    %1198 = vmatpush1.bf16.msra.mxu0 0
    %1199 = vmatprep.subr.bf16.mxu0 0
    %1200 = vmatpush1.bf16.msra.mxu0 0
    %1201 = vmatprep.subr.bf16.mxu0 0
    %1202 = vmatpush1.bf16.msra.mxu0 0
    %1203 = vmatprep.subr.bf16.mxu0 0
    %1204 = vmatpush1.bf16.msra.mxu0 0
    %1205 = vmatprep.subr.bf16.mxu0 0
    %1206 = vmatpush1.bf16.msra.mxu0 0
    %1207 = vmatprep.subr.bf16.mxu0 0
    %1208 = vmatpush1.bf16.msra.mxu0 0
    %1209 = vmatprep.mubr.bf16.mxu0 0
    %1210 = vmatmul.mubr.bf16.gmra.mrb[0].mxu0 %v1172
    %v1211 = vpop.f32.mrb[0].mxu0
    %v1212 = vadd.f32 0.0, %v1211
    %v1213 = vpop.f32.mrb[0].mxu0
    %v1214 = vpop.f32.mrb[0].mxu0
    %v1215 = vpop.f32.mrb[0].mxu0
    %1216 = vdwg.mxu0
    %v1217 = vrcp.pop %v1169
    %v1218 = vmul.f32 %v1212, %v1217
    %1220 = vrot.lane.b32.xlu0 %v882, 64
    %v1221 = vpop.permute.xlu0 %1220
    %1223 = vrot.lane.b32.xlu0 %v888, 64
    %v1224 = vpop.permute.xlu0 %1223
    %v1226 = vsel %vm895, %v1221, 0
    %v1229 = vsel %vm895, %v1224, 0
    %1231 = vmatprep.subr.bf16.mxu0 0
    %1232 = vmatpush1.bf16.xpose.msra.mxu0 %v1229
    %1233 = vmatprep.subr.bf16.mxu0 0
    %1234 = vmatpush1.bf16.xpose.msra.mxu0 0
    %1235 = vmatprep.subr.bf16.mxu0 0
    %1236 = vmatpush1.bf16.xpose.msra.mxu0 0
    %1237 = vmatprep.subr.bf16.mxu0 0
    %1238 = vmatpush1.bf16.xpose.msra.mxu0 0
    %1239 = vmatprep.subr.bf16.mxu0 0
    %1240 = vmatpush1.bf16.xpose.msra.mxu0 0
    %1241 = vmatprep.subr.bf16.mxu0 0
    %1242 = vmatpush1.bf16.xpose.msra.mxu0 0
    %1243 = vmatprep.subr.bf16.mxu0 0
    %1244 = vmatpush1.bf16.xpose.msra.mxu0 0
    %1245 = vmatprep.subr.bf16.mxu0 0
    %1246 = vmatpush1.bf16.xpose.msra.mxu0 0
    %1247 = vmatprep.subr.bf16.mxu0 0
    %1248 = vmatpush1.bf16.xpose.msra.mxu0 0
    %1249 = vmatprep.subr.bf16.mxu0 0
    %1250 = vmatpush1.bf16.xpose.msra.mxu0 0
    %1251 = vmatprep.subr.bf16.mxu0 0
    %1252 = vmatpush1.bf16.xpose.msra.mxu0 0
    %1253 = vmatprep.subr.bf16.mxu0 0
    %1254 = vmatpush1.bf16.xpose.msra.mxu0 0
    %1255 = vmatprep.subr.bf16.mxu0 0
    %1256 = vmatpush1.bf16.xpose.msra.mxu0 0
    %1257 = vmatprep.subr.bf16.mxu0 0
    %1258 = vmatpush1.bf16.xpose.msra.mxu0 0
    %1259 = vmatprep.subr.bf16.mxu0 0
    %1260 = vmatpush1.bf16.xpose.msra.mxu0 0
    %1261 = vmatprep.subr.bf16.mxu0 0
    %1262 = vmatpush1.bf16.xpose.msra.mxu0 0
    %1263 = vmatprep.mubr.bf16.mxu0 0
    %1264 = vmatmul.mubr.bf16.gmra.mrb[0].mxu0 %v1226
    %v1265 = vpop.f32.mrb[0].mxu0
    %v1266 = vadd.f32 0.0, %v1265
    %v1267 = vpop.f32.mrb[0].mxu0
    %v1268 = vpop.f32.mrb[0].mxu0
    %v1269 = vpop.f32.mrb[0].mxu0
    %1270 = vdwg.mxu0
    %v1271 = vsel %vm942, %v1266, -inf
    %1272 = vmax.xlane.f32.xlu0 %v1271
    %v1273 = vpop.xlane.xlu0 %1272
    %v1274 = vsub.f32 %v1266, %v1273
    %v1275 = vmul.f32 %v1274, 1.442695
    %v1276 = vpow.pop %v1275
    %v1277 = vsel %vm942, %v1276, 0.0
    %1278 = vadd.xlane.f32.xlu0 %v1277
    %v1279 = vpop.xlane.xlu0 %1278
    %v1280 = vpack.c.bf16 %v1276, %v1276
    %1282 = vrot.lane.b32.xlu0 %v894, 64
    %v1283 = vpop.permute.xlu0 %1282
    %v1285 = vsel %vm942, %v1280, 0
    %v1288 = vsel %vm956, %v1283, 0
    %1290 = vmatprep.subr.bf16.mxu0 0
    %1291 = vmatpush1.bf16.msra.mxu0 %v1288
    %1292 = vmatprep.subr.bf16.mxu0 0
    %1293 = vmatpush1.bf16.msra.mxu0 0
    %1294 = vmatprep.subr.bf16.mxu0 0
    %1295 = vmatpush1.bf16.msra.mxu0 0
    %1296 = vmatprep.subr.bf16.mxu0 0
    %1297 = vmatpush1.bf16.msra.mxu0 0
    %1298 = vmatprep.subr.bf16.mxu0 0
    %1299 = vmatpush1.bf16.msra.mxu0 0
    %1300 = vmatprep.subr.bf16.mxu0 0
    %1301 = vmatpush1.bf16.msra.mxu0 0
    %1302 = vmatprep.subr.bf16.mxu0 0
    %1303 = vmatpush1.bf16.msra.mxu0 0
    %1304 = vmatprep.subr.bf16.mxu0 0
    %1305 = vmatpush1.bf16.msra.mxu0 0
    %1306 = vmatprep.subr.bf16.mxu0 0
    %1307 = vmatpush1.bf16.msra.mxu0 0
    %1308 = vmatprep.subr.bf16.mxu0 0
    %1309 = vmatpush1.bf16.msra.mxu0 0
    %1310 = vmatprep.subr.bf16.mxu0 0
    %1311 = vmatpush1.bf16.msra.mxu0 0
    %1312 = vmatprep.subr.bf16.mxu0 0
    %1313 = vmatpush1.bf16.msra.mxu0 0
    %1314 = vmatprep.subr.bf16.mxu0 0
    %1315 = vmatpush1.bf16.msra.mxu0 0
    %1316 = vmatprep.subr.bf16.mxu0 0
    %1317 = vmatpush1.bf16.msra.mxu0 0
    %1318 = vmatprep.subr.bf16.mxu0 0
    %1319 = vmatpush1.bf16.msra.mxu0 0
    %1320 = vmatprep.subr.bf16.mxu0 0
    %1321 = vmatpush1.bf16.msra.mxu0 0
    %1322 = vmatprep.mubr.bf16.mxu0 0
    %1323 = vmatmul.mubr.bf16.gmra.mrb[0].mxu0 %v1285
    %v1324 = vpop.f32.mrb[0].mxu0
    %v1325 = vadd.f32 0.0, %v1324
    %v1326 = vpop.f32.mrb[0].mxu0
    %v1327 = vpop.f32.mrb[0].mxu0
    %v1328 = vpop.f32.mrb[0].mxu0
    %1329 = vdwg.mxu0
    %v1330 = vrcp.pop %v1279
    %v1331 = vmul.f32 %v1325, %v1330
    %1333 = vrot.lane.b32.xlu0 %v1114, 64
    %v1334 = vpop.permute.xlu0 %1333
    %1337 = vrot.lane.b32.xlu0 %v1331, 64
    %v1338 = vpop.permute.xlu0 %1337
    %v1340 = vsel %vm895, %v1001, %v1334
    %v1341 = vsel %vm895, %v1218, %v1338
    %s1342 = smul.addr %s876, 8
    %s1343 = scalar_lea.vmem [#allocation5], %s1342
    %1344 = vst [vmem:[%s1343] sm:$0xff] %v1340
    %1345 = vst [vmem:[%s1343 + $0x8] sm:$0xff] %v1341
    %s1346 = smul.u32 1, 2
    %s1347 = smul.addr %s1346, 8
    %s1348 = scalar_lea.vmem [#allocation2], %s1347
    %v1349 = vld [vmem:[%s1348] sm:$0xff]
    %v1350 = vld [vmem:[%s1348 + $0x8] sm:$0xff]
    %v1351 = vpack.c.bf16 %v1349, %v1349
    %v1352 = vpack.c.bf16 %v1350, %v1350
    %s1353 = smul.addr %s1346, 8
    %s1354 = scalar_lea.vmem [#allocation3], %s1353
    %v1355 = vld [vmem:[%s1354] sm:$0xff]
    %v1356 = vld [vmem:[%s1354 + $0x8] sm:$0xff]
    %v1357 = vpack.c.bf16 %v1355, %v1355
    %v1358 = vpack.c.bf16 %v1356, %v1356
    %s1359 = smul.addr %s1346, 8
    %s1360 = scalar_lea.vmem [#allocation4], %s1359
    %v1361 = vld [vmem:[%s1360] sm:$0xff]
    %v1362 = vld [vmem:[%s1360 + $0x8] sm:$0xff]
    %v1363 = vpack.c.bf16 %v1361, %v1361
    %v1364 = vpack.c.bf16 %v1362, %v1362
    %v1366 = vsel %vm895, %v1351, 0
    %v1369 = vsel %vm895, %v1357, 0
    %1371 = vmatprep.subr.bf16.mxu0 0
    %1372 = vmatpush1.bf16.xpose.msra.mxu0 %v1369
    %1373 = vmatprep.subr.bf16.mxu0 0
    %1374 = vmatpush1.bf16.xpose.msra.mxu0 0
    %1375 = vmatprep.subr.bf16.mxu0 0
    %1376 = vmatpush1.bf16.xpose.msra.mxu0 0
    %1377 = vmatprep.subr.bf16.mxu0 0
    %1378 = vmatpush1.bf16.xpose.msra.mxu0 0
    %1379 = vmatprep.subr.bf16.mxu0 0
    %1380 = vmatpush1.bf16.xpose.msra.mxu0 0
    %1381 = vmatprep.subr.bf16.mxu0 0
    %1382 = vmatpush1.bf16.xpose.msra.mxu0 0
    %1383 = vmatprep.subr.bf16.mxu0 0
    %1384 = vmatpush1.bf16.xpose.msra.mxu0 0
    %1385 = vmatprep.subr.bf16.mxu0 0
    %1386 = vmatpush1.bf16.xpose.msra.mxu0 0
    %1387 = vmatprep.subr.bf16.mxu0 0
    %1388 = vmatpush1.bf16.xpose.msra.mxu0 0
    %1389 = vmatprep.subr.bf16.mxu0 0
    %1390 = vmatpush1.bf16.xpose.msra.mxu0 0
    %1391 = vmatprep.subr.bf16.mxu0 0
    %1392 = vmatpush1.bf16.xpose.msra.mxu0 0
    %1393 = vmatprep.subr.bf16.mxu0 0
    %1394 = vmatpush1.bf16.xpose.msra.mxu0 0
    %1395 = vmatprep.subr.bf16.mxu0 0
    %1396 = vmatpush1.bf16.xpose.msra.mxu0 0
    %1397 = vmatprep.subr.bf16.mxu0 0
    %1398 = vmatpush1.bf16.xpose.msra.mxu0 0
    %1399 = vmatprep.subr.bf16.mxu0 0
    %1400 = vmatpush1.bf16.xpose.msra.mxu0 0
    %1401 = vmatprep.subr.bf16.mxu0 0
    %1402 = vmatpush1.bf16.xpose.msra.mxu0 0
    %1403 = vmatprep.mubr.bf16.mxu0 0
    %1404 = vmatmul.mubr.bf16.gmra.mrb[0].mxu0 %v1366
    %v1405 = vpop.f32.mrb[0].mxu0
    %v1406 = vadd.f32 0.0, %v1405
    %v1407 = vpop.f32.mrb[0].mxu0
    %v1408 = vpop.f32.mrb[0].mxu0
    %v1409 = vpop.f32.mrb[0].mxu0
    %1410 = vdwg.mxu0
    %v1411 = vsel %vm942, %v1406, -inf
    %1412 = vmax.xlane.f32.xlu0 %v1411
    %v1413 = vpop.xlane.xlu0 %1412
    %v1414 = vsub.f32 %v1406, %v1413
    %v1415 = vmul.f32 %v1414, 1.442695
    %v1416 = vpow.pop %v1415
    %v1417 = vsel %vm942, %v1416, 0.0
    %1418 = vadd.xlane.f32.xlu0 %v1417
    %v1419 = vpop.xlane.xlu0 %1418
    %v1420 = vpack.c.bf16 %v1416, %v1416
    %v1422 = vsel %vm942, %v1420, 0
    %v1425 = vsel %vm956, %v1363, 0
    %1427 = vmatprep.subr.bf16.mxu0 0
    %1428 = vmatpush1.bf16.msra.mxu0 %v1425
    %1429 = vmatprep.subr.bf16.mxu0 0
    %1430 = vmatpush1.bf16.msra.mxu0 0
    %1431 = vmatprep.subr.bf16.mxu0 0
    %1432 = vmatpush1.bf16.msra.mxu0 0
    %1433 = vmatprep.subr.bf16.mxu0 0
    %1434 = vmatpush1.bf16.msra.mxu0 0
    %1435 = vmatprep.subr.bf16.mxu0 0
    %1436 = vmatpush1.bf16.msra.mxu0 0
    %1437 = vmatprep.subr.bf16.mxu0 0
    %1438 = vmatpush1.bf16.msra.mxu0 0
    %1439 = vmatprep.subr.bf16.mxu0 0
    %1440 = vmatpush1.bf16.msra.mxu0 0
    %1441 = vmatprep.subr.bf16.mxu0 0
    %1442 = vmatpush1.bf16.msra.mxu0 0
    %1443 = vmatprep.subr.bf16.mxu0 0
    %1444 = vmatpush1.bf16.msra.mxu0 0
    %1445 = vmatprep.subr.bf16.mxu0 0
    %1446 = vmatpush1.bf16.msra.mxu0 0
    %1447 = vmatprep.subr.bf16.mxu0 0
    %1448 = vmatpush1.bf16.msra.mxu0 0
    %1449 = vmatprep.subr.bf16.mxu0 0
    %1450 = vmatpush1.bf16.msra.mxu0 0
    %1451 = vmatprep.subr.bf16.mxu0 0
    %1452 = vmatpush1.bf16.msra.mxu0 0
    %1453 = vmatprep.subr.bf16.mxu0 0
    %1454 = vmatpush1.bf16.msra.mxu0 0
    %1455 = vmatprep.subr.bf16.mxu0 0
    %1456 = vmatpush1.bf16.msra.mxu0 0
    %1457 = vmatprep.subr.bf16.mxu0 0
    %1458 = vmatpush1.bf16.msra.mxu0 0
    %1459 = vmatprep.mubr.bf16.mxu0 0
    %1460 = vmatmul.mubr.bf16.gmra.mrb[0].mxu0 %v1422
    %v1461 = vpop.f32.mrb[0].mxu0
    %v1462 = vadd.f32 0.0, %v1461
    %v1463 = vpop.f32.mrb[0].mxu0
    %v1464 = vpop.f32.mrb[0].mxu0
    %v1465 = vpop.f32.mrb[0].mxu0
    %1466 = vdwg.mxu0
    %v1467 = vrcp.pop %v1419
    %v1468 = vmul.f32 %v1462, %v1467
    %1470 = vrot.lane.b32.xlu0 %v1351, 64
    %v1471 = vpop.permute.xlu0 %1470
    %1473 = vrot.lane.b32.xlu0 %v1357, 64
    %v1474 = vpop.permute.xlu0 %1473
    %v1476 = vsel %vm895, %v1471, 0
    %v1479 = vsel %vm895, %v1474, 0
    %1481 = vmatprep.subr.bf16.mxu0 0
    %1482 = vmatpush1.bf16.xpose.msra.mxu0 %v1479
    %1483 = vmatprep.subr.bf16.mxu0 0
    %1484 = vmatpush1.bf16.xpose.msra.mxu0 0
    %1485 = vmatprep.subr.bf16.mxu0 0
    %1486 = vmatpush1.bf16.xpose.msra.mxu0 0
    %1487 = vmatprep.subr.bf16.mxu0 0
    %1488 = vmatpush1.bf16.xpose.msra.mxu0 0
    %1489 = vmatprep.subr.bf16.mxu0 0
    %1490 = vmatpush1.bf16.xpose.msra.mxu0 0
    %1491 = vmatprep.subr.bf16.mxu0 0
    %1492 = vmatpush1.bf16.xpose.msra.mxu0 0
    %1493 = vmatprep.subr.bf16.mxu0 0
    %1494 = vmatpush1.bf16.xpose.msra.mxu0 0
    %1495 = vmatprep.subr.bf16.mxu0 0
    %1496 = vmatpush1.bf16.xpose.msra.mxu0 0
    %1497 = vmatprep.subr.bf16.mxu0 0
    %1498 = vmatpush1.bf16.xpose.msra.mxu0 0
    %1499 = vmatprep.subr.bf16.mxu0 0
    %1500 = vmatpush1.bf16.xpose.msra.mxu0 0
    %1501 = vmatprep.subr.bf16.mxu0 0
    %1502 = vmatpush1.bf16.xpose.msra.mxu0 0
    %1503 = vmatprep.subr.bf16.mxu0 0
    %1504 = vmatpush1.bf16.xpose.msra.mxu0 0
    %1505 = vmatprep.subr.bf16.mxu0 0
    %1506 = vmatpush1.bf16.xpose.msra.mxu0 0
    %1507 = vmatprep.subr.bf16.mxu0 0
    %1508 = vmatpush1.bf16.xpose.msra.mxu0 0
    %1509 = vmatprep.subr.bf16.mxu0 0
    %1510 = vmatpush1.bf16.xpose.msra.mxu0 0
    %1511 = vmatprep.subr.bf16.mxu0 0
    %1512 = vmatpush1.bf16.xpose.msra.mxu0 0
    %1513 = vmatprep.mubr.bf16.mxu0 0
    %1514 = vmatmul.mubr.bf16.gmra.mrb[0].mxu0 %v1476
    %v1515 = vpop.f32.mrb[0].mxu0
    %v1516 = vadd.f32 0.0, %v1515
    %v1517 = vpop.f32.mrb[0].mxu0
    %v1518 = vpop.f32.mrb[0].mxu0
    %v1519 = vpop.f32.mrb[0].mxu0
    %1520 = vdwg.mxu0
    %v1521 = vsel %vm942, %v1516, -inf
    %1522 = vmax.xlane.f32.xlu0 %v1521
    %v1523 = vpop.xlane.xlu0 %1522
    %v1524 = vsub.f32 %v1516, %v1523
    %v1525 = vmul.f32 %v1524, 1.442695
    %v1526 = vpow.pop %v1525
    %v1527 = vsel %vm942, %v1526, 0.0
    %1528 = vadd.xlane.f32.xlu0 %v1527
    %v1529 = vpop.xlane.xlu0 %1528
    %v1530 = vpack.c.bf16 %v1526, %v1526
    %1532 = vrot.lane.b32.xlu0 %v1363, 64
    %v1533 = vpop.permute.xlu0 %1532
    %v1535 = vsel %vm942, %v1530, 0
    %v1538 = vsel %vm956, %v1533, 0
    %1540 = vmatprep.subr.bf16.mxu0 0
    %1541 = vmatpush1.bf16.msra.mxu0 %v1538
    %1542 = vmatprep.subr.bf16.mxu0 0
    %1543 = vmatpush1.bf16.msra.mxu0 0
    %1544 = vmatprep.subr.bf16.mxu0 0
    %1545 = vmatpush1.bf16.msra.mxu0 0
    %1546 = vmatprep.subr.bf16.mxu0 0
    %1547 = vmatpush1.bf16.msra.mxu0 0
    %1548 = vmatprep.subr.bf16.mxu0 0
    %1549 = vmatpush1.bf16.msra.mxu0 0
    %1550 = vmatprep.subr.bf16.mxu0 0
    %1551 = vmatpush1.bf16.msra.mxu0 0
    %1552 = vmatprep.subr.bf16.mxu0 0
    %1553 = vmatpush1.bf16.msra.mxu0 0
    %1554 = vmatprep.subr.bf16.mxu0 0
    %1555 = vmatpush1.bf16.msra.mxu0 0
    %1556 = vmatprep.subr.bf16.mxu0 0
    %1557 = vmatpush1.bf16.msra.mxu0 0
    %1558 = vmatprep.subr.bf16.mxu0 0
    %1559 = vmatpush1.bf16.msra.mxu0 0
    %1560 = vmatprep.subr.bf16.mxu0 0
    %1561 = vmatpush1.bf16.msra.mxu0 0
    %1562 = vmatprep.subr.bf16.mxu0 0
    %1563 = vmatpush1.bf16.msra.mxu0 0
    %1564 = vmatprep.subr.bf16.mxu0 0
    %1565 = vmatpush1.bf16.msra.mxu0 0
    %1566 = vmatprep.subr.bf16.mxu0 0
    %1567 = vmatpush1.bf16.msra.mxu0 0
    %1568 = vmatprep.subr.bf16.mxu0 0
    %1569 = vmatpush1.bf16.msra.mxu0 0
    %1570 = vmatprep.subr.bf16.mxu0 0
    %1571 = vmatpush1.bf16.msra.mxu0 0
    %1572 = vmatprep.mubr.bf16.mxu0 0
    %1573 = vmatmul.mubr.bf16.gmra.mrb[0].mxu0 %v1535
    %v1574 = vpop.f32.mrb[0].mxu0
    %v1575 = vadd.f32 0.0, %v1574
    %v1576 = vpop.f32.mrb[0].mxu0
    %v1577 = vpop.f32.mrb[0].mxu0
    %v1578 = vpop.f32.mrb[0].mxu0
    %1579 = vdwg.mxu0
    %v1580 = vrcp.pop %v1529
    %v1581 = vmul.f32 %v1575, %v1580
    %v1583 = vsel %vm895, %v1352, 0
    %v1586 = vsel %vm895, %v1358, 0
    %1588 = vmatprep.subr.bf16.mxu0 0
    %1589 = vmatpush1.bf16.xpose.msra.mxu0 %v1586
    %1590 = vmatprep.subr.bf16.mxu0 0
    %1591 = vmatpush1.bf16.xpose.msra.mxu0 0
    %1592 = vmatprep.subr.bf16.mxu0 0
    %1593 = vmatpush1.bf16.xpose.msra.mxu0 0
    %1594 = vmatprep.subr.bf16.mxu0 0
    %1595 = vmatpush1.bf16.xpose.msra.mxu0 0
    %1596 = vmatprep.subr.bf16.mxu0 0
    %1597 = vmatpush1.bf16.xpose.msra.mxu0 0
    %1598 = vmatprep.subr.bf16.mxu0 0
    %1599 = vmatpush1.bf16.xpose.msra.mxu0 0
    %1600 = vmatprep.subr.bf16.mxu0 0
    %1601 = vmatpush1.bf16.xpose.msra.mxu0 0
    %1602 = vmatprep.subr.bf16.mxu0 0
    %1603 = vmatpush1.bf16.xpose.msra.mxu0 0
    %1604 = vmatprep.subr.bf16.mxu0 0
    %1605 = vmatpush1.bf16.xpose.msra.mxu0 0
    %1606 = vmatprep.subr.bf16.mxu0 0
    %1607 = vmatpush1.bf16.xpose.msra.mxu0 0
    %1608 = vmatprep.subr.bf16.mxu0 0
    %1609 = vmatpush1.bf16.xpose.msra.mxu0 0
    %1610 = vmatprep.subr.bf16.mxu0 0
    %1611 = vmatpush1.bf16.xpose.msra.mxu0 0
    %1612 = vmatprep.subr.bf16.mxu0 0
    %1613 = vmatpush1.bf16.xpose.msra.mxu0 0
    %1614 = vmatprep.subr.bf16.mxu0 0
    %1615 = vmatpush1.bf16.xpose.msra.mxu0 0
    %1616 = vmatprep.subr.bf16.mxu0 0
    %1617 = vmatpush1.bf16.xpose.msra.mxu0 0
    %1618 = vmatprep.subr.bf16.mxu0 0
    %1619 = vmatpush1.bf16.xpose.msra.mxu0 0
    %1620 = vmatprep.mubr.bf16.mxu0 0
    %1621 = vmatmul.mubr.bf16.gmra.mrb[0].mxu0 %v1583
    %v1622 = vpop.f32.mrb[0].mxu0
    %v1623 = vadd.f32 0.0, %v1622
    %v1624 = vpop.f32.mrb[0].mxu0
    %v1625 = vpop.f32.mrb[0].mxu0
    %v1626 = vpop.f32.mrb[0].mxu0
    %1627 = vdwg.mxu0
    %v1628 = vsel %vm942, %v1623, -inf
    %1629 = vmax.xlane.f32.xlu0 %v1628
    %v1630 = vpop.xlane.xlu0 %1629
    %v1631 = vsub.f32 %v1623, %v1630
    %v1632 = vmul.f32 %v1631, 1.442695
    %v1633 = vpow.pop %v1632
    %v1634 = vsel %vm942, %v1633, 0.0
    %1635 = vadd.xlane.f32.xlu0 %v1634
    %v1636 = vpop.xlane.xlu0 %1635
    %v1637 = vpack.c.bf16 %v1633, %v1633
    %v1639 = vsel %vm942, %v1637, 0
    %v1642 = vsel %vm956, %v1364, 0
    %1644 = vmatprep.subr.bf16.mxu0 0
    %1645 = vmatpush1.bf16.msra.mxu0 %v1642
    %1646 = vmatprep.subr.bf16.mxu0 0
    %1647 = vmatpush1.bf16.msra.mxu0 0
    %1648 = vmatprep.subr.bf16.mxu0 0
    %1649 = vmatpush1.bf16.msra.mxu0 0
    %1650 = vmatprep.subr.bf16.mxu0 0
    %1651 = vmatpush1.bf16.msra.mxu0 0
    %1652 = vmatprep.subr.bf16.mxu0 0
    %1653 = vmatpush1.bf16.msra.mxu0 0
    %1654 = vmatprep.subr.bf16.mxu0 0
    %1655 = vmatpush1.bf16.msra.mxu0 0
    %1656 = vmatprep.subr.bf16.mxu0 0
    %1657 = vmatpush1.bf16.msra.mxu0 0
    %1658 = vmatprep.subr.bf16.mxu0 0
    %1659 = vmatpush1.bf16.msra.mxu0 0
    %1660 = vmatprep.subr.bf16.mxu0 0
    %1661 = vmatpush1.bf16.msra.mxu0 0
    %1662 = vmatprep.subr.bf16.mxu0 0
    %1663 = vmatpush1.bf16.msra.mxu0 0
    %1664 = vmatprep.subr.bf16.mxu0 0
    %1665 = vmatpush1.bf16.msra.mxu0 0
    %1666 = vmatprep.subr.bf16.mxu0 0
    %1667 = vmatpush1.bf16.msra.mxu0 0
    %1668 = vmatprep.subr.bf16.mxu0 0
    %1669 = vmatpush1.bf16.msra.mxu0 0
    %1670 = vmatprep.subr.bf16.mxu0 0
    %1671 = vmatpush1.bf16.msra.mxu0 0
    %1672 = vmatprep.subr.bf16.mxu0 0
    %1673 = vmatpush1.bf16.msra.mxu0 0
    %1674 = vmatprep.subr.bf16.mxu0 0
    %1675 = vmatpush1.bf16.msra.mxu0 0
    %1676 = vmatprep.mubr.bf16.mxu0 0
    %1677 = vmatmul.mubr.bf16.gmra.mrb[0].mxu0 %v1639
    %v1678 = vpop.f32.mrb[0].mxu0
    %v1679 = vadd.f32 0.0, %v1678
    %v1680 = vpop.f32.mrb[0].mxu0
    %v1681 = vpop.f32.mrb[0].mxu0
    %v1682 = vpop.f32.mrb[0].mxu0
    %1683 = vdwg.mxu0
    %v1684 = vrcp.pop %v1636
    %v1685 = vmul.f32 %v1679, %v1684
    %1687 = vrot.lane.b32.xlu0 %v1352, 64
    %v1688 = vpop.permute.xlu0 %1687
    %1690 = vrot.lane.b32.xlu0 %v1358, 64
    %v1691 = vpop.permute.xlu0 %1690
    %v1693 = vsel %vm895, %v1688, 0
    %v1696 = vsel %vm895, %v1691, 0
    %1698 = vmatprep.subr.bf16.mxu0 0
    %1699 = vmatpush1.bf16.xpose.msra.mxu0 %v1696
    %1700 = vmatprep.subr.bf16.mxu0 0
    %1701 = vmatpush1.bf16.xpose.msra.mxu0 0
    %1702 = vmatprep.subr.bf16.mxu0 0
    %1703 = vmatpush1.bf16.xpose.msra.mxu0 0
    %1704 = vmatprep.subr.bf16.mxu0 0
    %1705 = vmatpush1.bf16.xpose.msra.mxu0 0
    %1706 = vmatprep.subr.bf16.mxu0 0
    %1707 = vmatpush1.bf16.xpose.msra.mxu0 0
    %1708 = vmatprep.subr.bf16.mxu0 0
    %1709 = vmatpush1.bf16.xpose.msra.mxu0 0
    %1710 = vmatprep.subr.bf16.mxu0 0
    %1711 = vmatpush1.bf16.xpose.msra.mxu0 0
    %1712 = vmatprep.subr.bf16.mxu0 0
    %1713 = vmatpush1.bf16.xpose.msra.mxu0 0
    %1714 = vmatprep.subr.bf16.mxu0 0
    %1715 = vmatpush1.bf16.xpose.msra.mxu0 0
    %1716 = vmatprep.subr.bf16.mxu0 0
    %1717 = vmatpush1.bf16.xpose.msra.mxu0 0
    %1718 = vmatprep.subr.bf16.mxu0 0
    %1719 = vmatpush1.bf16.xpose.msra.mxu0 0
    %1720 = vmatprep.subr.bf16.mxu0 0
    %1721 = vmatpush1.bf16.xpose.msra.mxu0 0
    %1722 = vmatprep.subr.bf16.mxu0 0
    %1723 = vmatpush1.bf16.xpose.msra.mxu0 0
    %1724 = vmatprep.subr.bf16.mxu0 0
    %1725 = vmatpush1.bf16.xpose.msra.mxu0 0
    %1726 = vmatprep.subr.bf16.mxu0 0
    %1727 = vmatpush1.bf16.xpose.msra.mxu0 0
    %1728 = vmatprep.subr.bf16.mxu0 0
    %1729 = vmatpush1.bf16.xpose.msra.mxu0 0
    %1730 = vmatprep.mubr.bf16.mxu0 0
    %1731 = vmatmul.mubr.bf16.gmra.mrb[0].mxu0 %v1693
    %v1732 = vpop.f32.mrb[0].mxu0
    %v1733 = vadd.f32 0.0, %v1732
    %v1734 = vpop.f32.mrb[0].mxu0
    %v1735 = vpop.f32.mrb[0].mxu0
    %v1736 = vpop.f32.mrb[0].mxu0
    %1737 = vdwg.mxu0
    %v1738 = vsel %vm942, %v1733, -inf
    %1739 = vmax.xlane.f32.xlu0 %v1738
    %v1740 = vpop.xlane.xlu0 %1739
    %v1741 = vsub.f32 %v1733, %v1740
    %v1742 = vmul.f32 %v1741, 1.442695
    %v1743 = vpow.pop %v1742
    %v1744 = vsel %vm942, %v1743, 0.0
    %1745 = vadd.xlane.f32.xlu0 %v1744
    %v1746 = vpop.xlane.xlu0 %1745
    %v1747 = vpack.c.bf16 %v1743, %v1743
    %1749 = vrot.lane.b32.xlu0 %v1364, 64
    %v1750 = vpop.permute.xlu0 %1749
    %v1752 = vsel %vm942, %v1747, 0
    %v1755 = vsel %vm956, %v1750, 0
    %1757 = vmatprep.subr.bf16.mxu0 0
    %1758 = vmatpush1.bf16.msra.mxu0 %v1755
    %1759 = vmatprep.subr.bf16.mxu0 0
    %1760 = vmatpush1.bf16.msra.mxu0 0
    %1761 = vmatprep.subr.bf16.mxu0 0
    %1762 = vmatpush1.bf16.msra.mxu0 0
    %1763 = vmatprep.subr.bf16.mxu0 0
    %1764 = vmatpush1.bf16.msra.mxu0 0
    %1765 = vmatprep.subr.bf16.mxu0 0
    %1766 = vmatpush1.bf16.msra.mxu0 0
    %1767 = vmatprep.subr.bf16.mxu0 0
    %1768 = vmatpush1.bf16.msra.mxu0 0
    %1769 = vmatprep.subr.bf16.mxu0 0
    %1770 = vmatpush1.bf16.msra.mxu0 0
    %1771 = vmatprep.subr.bf16.mxu0 0
    %1772 = vmatpush1.bf16.msra.mxu0 0
    %1773 = vmatprep.subr.bf16.mxu0 0
    %1774 = vmatpush1.bf16.msra.mxu0 0
    %1775 = vmatprep.subr.bf16.mxu0 0
    %1776 = vmatpush1.bf16.msra.mxu0 0
    %1777 = vmatprep.subr.bf16.mxu0 0
    %1778 = vmatpush1.bf16.msra.mxu0 0
    %1779 = vmatprep.subr.bf16.mxu0 0
    %1780 = vmatpush1.bf16.msra.mxu0 0
    %1781 = vmatprep.subr.bf16.mxu0 0
    %1782 = vmatpush1.bf16.msra.mxu0 0
    %1783 = vmatprep.subr.bf16.mxu0 0
    %1784 = vmatpush1.bf16.msra.mxu0 0
    %1785 = vmatprep.subr.bf16.mxu0 0
    %1786 = vmatpush1.bf16.msra.mxu0 0
    %1787 = vmatprep.subr.bf16.mxu0 0
    %1788 = vmatpush1.bf16.msra.mxu0 0
    %1789 = vmatprep.mubr.bf16.mxu0 0
    %1790 = vmatmul.mubr.bf16.gmra.mrb[0].mxu0 %v1752
    %v1791 = vpop.f32.mrb[0].mxu0
    %v1792 = vadd.f32 0.0, %v1791
    %v1793 = vpop.f32.mrb[0].mxu0
    %v1794 = vpop.f32.mrb[0].mxu0
    %v1795 = vpop.f32.mrb[0].mxu0
    %1796 = vdwg.mxu0
    %v1797 = vrcp.pop %v1746
    %v1798 = vmul.f32 %v1792, %v1797
    %1800 = vrot.lane.b32.xlu0 %v1581, 64
    %v1801 = vpop.permute.xlu0 %1800
    %1804 = vrot.lane.b32.xlu0 %v1798, 64
    %v1805 = vpop.permute.xlu0 %1804
    %v1807 = vsel %vm895, %v1468, %v1801
    %v1808 = vsel %vm895, %v1685, %v1805
    %s1809 = smul.addr %s1346, 8
    %s1810 = scalar_lea.vmem [#allocation5], %s1809
    %1811 = vst [vmem:[%s1810] sm:$0xff] %v1807
    %1812 = vst [vmem:[%s1810 + $0x8] sm:$0xff] %v1808
    %v1813 = vld [vmem:[#allocation5] sm:$0xff]
    %v1814 = vld [vmem:[#allocation5 + $0x8] sm:$0xff]
    %v1815 = vld [vmem:[#allocation5 + $0x10] sm:$0xff]
    %v1816 = vld [vmem:[#allocation5 + $0x18] sm:$0xff]
    %v1817 = vpack.c.bf16 %v1815, %v1813
    %v1818 = vpack.c.bf16 %v1816, %v1814
    %v1819 = vld [vmem:[#allocation17] sm:$0xff]
    %v1820 = vld [vmem:[#allocation17 + $0x8] sm:$0xff]
    %v1821 = vld [vmem:[#allocation17 + $0x10] sm:$0xff]
    %v1822 = vld [vmem:[#allocation17 + $0x18] sm:$0xff]
    %v1823 = vld [vmem:[#allocation17 + $0x20] sm:$0xff]
    %v1824 = vld [vmem:[#allocation17 + $0x28] sm:$0xff]
    %v1825 = vld [vmem:[#allocation17 + $0x30] sm:$0xff]
    %v1826 = vld [vmem:[#allocation17 + $0x38] sm:$0xff]
    %v1827 = vld [vmem:[#allocation17 + $0x40] sm:$0xff]
    %v1828 = vld [vmem:[#allocation17 + $0x48] sm:$0xff]
    %v1829 = vld [vmem:[#allocation17 + $0x50] sm:$0xff]
    %v1830 = vld [vmem:[#allocation17 + $0x58] sm:$0xff]
    %v1831 = vld [vmem:[#allocation17 + $0x60] sm:$0xff]
    %v1832 = vld [vmem:[#allocation17 + $0x68] sm:$0xff]
    %v1833 = vld [vmem:[#allocation17 + $0x70] sm:$0xff]
    %v1834 = vld [vmem:[#allocation17 + $0x78] sm:$0xff]
    %v1835 = vld [vmem:[#allocation17 + $0x80] sm:$0xff]
    %v1836 = vld [vmem:[#allocation17 + $0x88] sm:$0xff]
    %v1837 = vld [vmem:[#allocation17 + $0x90] sm:$0xff]
    %v1838 = vld [vmem:[#allocation17 + $0x98] sm:$0xff]
    %v1839 = vld [vmem:[#allocation17 + $0xa0] sm:$0xff]
    %v1840 = vld [vmem:[#allocation17 + $0xa8] sm:$0xff]
    %v1841 = vld [vmem:[#allocation17 + $0xb0] sm:$0xff]
    %v1842 = vld [vmem:[#allocation17 + $0xb8] sm:$0xff]
    %v1843 = vld [vmem:[#allocation17 + $0xc0] sm:$0xff]
    %v1844 = vld [vmem:[#allocation17 + $0xc8] sm:$0xff]
    %v1845 = vld [vmem:[#allocation17 + $0xd0] sm:$0xff]
    %v1846 = vld [vmem:[#allocation17 + $0xd8] sm:$0xff]
    %v1847 = vld [vmem:[#allocation17 + $0xe0] sm:$0xff]
    %v1848 = vld [vmem:[#allocation17 + $0xe8] sm:$0xff]
    %v1849 = vld [vmem:[#allocation17 + $0xf0] sm:$0xff]
    %v1850 = vld [vmem:[#allocation17 + $0xf8] sm:$0xff]
    %v1883 = vunpack.c.l.b16 %v1819
    %v1884 = vunpack.c.h.b16 %v1819
    %v1885 = vunpack.c.l.b16 %v1820
    %v1886 = vunpack.c.h.b16 %v1820
    %v1887 = vunpack.c.l.b16 %v1821
    %v1888 = vunpack.c.h.b16 %v1821
    %v1889 = vunpack.c.l.b16 %v1822
    %v1890 = vunpack.c.h.b16 %v1822
    %v1891 = vunpack.c.l.b16 %v1823
    %v1892 = vunpack.c.h.b16 %v1823
    %v1893 = vunpack.c.l.b16 %v1824
    %v1894 = vunpack.c.h.b16 %v1824
    %v1895 = vunpack.c.l.b16 %v1825
    %v1896 = vunpack.c.h.b16 %v1825
    %v1897 = vunpack.c.l.b16 %v1826
    %v1898 = vunpack.c.h.b16 %v1826
    %v1899 = vunpack.c.l.b16 %v1827
    %v1900 = vunpack.c.h.b16 %v1827
    %v1901 = vunpack.c.l.b16 %v1828
    %v1902 = vunpack.c.h.b16 %v1828
    %v1903 = vunpack.c.l.b16 %v1829
    %v1904 = vunpack.c.h.b16 %v1829
    %v1905 = vunpack.c.l.b16 %v1830
    %v1906 = vunpack.c.h.b16 %v1830
    %v1907 = vunpack.c.l.b16 %v1831
    %v1908 = vunpack.c.h.b16 %v1831
    %v1909 = vunpack.c.l.b16 %v1832
    %v1910 = vunpack.c.h.b16 %v1832
    %v1911 = vunpack.c.l.b16 %v1833
    %v1912 = vunpack.c.h.b16 %v1833
    %v1913 = vunpack.c.l.b16 %v1834
    %v1914 = vunpack.c.h.b16 %v1834
    %v1915 = vunpack.c.l.b16 %v1835
    %v1916 = vunpack.c.h.b16 %v1835
    %v1917 = vunpack.c.l.b16 %v1836
    %v1918 = vunpack.c.h.b16 %v1836
    %v1919 = vunpack.c.l.b16 %v1837
    %v1920 = vunpack.c.h.b16 %v1837
    %v1921 = vunpack.c.l.b16 %v1838
    %v1922 = vunpack.c.h.b16 %v1838
    %v1923 = vunpack.c.l.b16 %v1839
    %v1924 = vunpack.c.h.b16 %v1839
    %v1925 = vunpack.c.l.b16 %v1840
    %v1926 = vunpack.c.h.b16 %v1840
    %v1927 = vunpack.c.l.b16 %v1841
    %v1928 = vunpack.c.h.b16 %v1841
    %v1929 = vunpack.c.l.b16 %v1842
    %v1930 = vunpack.c.h.b16 %v1842
    %v1931 = vunpack.c.l.b16 %v1843
    %v1932 = vunpack.c.h.b16 %v1843
    %v1933 = vunpack.c.l.b16 %v1844
    %v1934 = vunpack.c.h.b16 %v1844
    %v1935 = vunpack.c.l.b16 %v1845
    %v1936 = vunpack.c.h.b16 %v1845
    %v1937 = vunpack.c.l.b16 %v1846
    %v1938 = vunpack.c.h.b16 %v1846
    %v1939 = vunpack.c.l.b16 %v1847
    %v1940 = vunpack.c.h.b16 %v1847
    %v1941 = vunpack.c.l.b16 %v1848
    %v1942 = vunpack.c.h.b16 %v1848
    %v1943 = vunpack.c.l.b16 %v1849
    %v1944 = vunpack.c.h.b16 %v1849
    %v1945 = vunpack.c.l.b16 %v1850
    %v1946 = vunpack.c.h.b16 %v1850
    %v1947 = vpack.c.b16 %v1885, %v1883
    %v1948 = vpack.c.b16 %v1886, %v1884
    %v1949 = vpack.c.b16 %v1889, %v1887
    %v1950 = vpack.c.b16 %v1890, %v1888
    %v1951 = vpack.c.b16 %v1893, %v1891
    %v1952 = vpack.c.b16 %v1894, %v1892
    %v1953 = vpack.c.b16 %v1897, %v1895
    %v1954 = vpack.c.b16 %v1898, %v1896
    %v1955 = vpack.c.b16 %v1901, %v1899
    %v1956 = vpack.c.b16 %v1902, %v1900
    %v1957 = vpack.c.b16 %v1905, %v1903
    %v1958 = vpack.c.b16 %v1906, %v1904
    %v1959 = vpack.c.b16 %v1909, %v1907
    %v1960 = vpack.c.b16 %v1910, %v1908
    %v1961 = vpack.c.b16 %v1913, %v1911
    %v1962 = vpack.c.b16 %v1914, %v1912
    %v1963 = vpack.c.b16 %v1917, %v1915
    %v1964 = vpack.c.b16 %v1918, %v1916
    %v1965 = vpack.c.b16 %v1921, %v1919
    %v1966 = vpack.c.b16 %v1922, %v1920
    %v1967 = vpack.c.b16 %v1925, %v1923
    %v1968 = vpack.c.b16 %v1926, %v1924
    %v1969 = vpack.c.b16 %v1929, %v1927
    %v1970 = vpack.c.b16 %v1930, %v1928
    %v1971 = vpack.c.b16 %v1933, %v1931
    %v1972 = vpack.c.b16 %v1934, %v1932
    %v1973 = vpack.c.b16 %v1937, %v1935
    %v1974 = vpack.c.b16 %v1938, %v1936
    %v1975 = vpack.c.b16 %v1941, %v1939
    %v1976 = vpack.c.b16 %v1942, %v1940
    %v1977 = vpack.c.b16 %v1945, %v1943
    %v1978 = vpack.c.b16 %v1946, %v1944
    %2011 = vmatprep.subr.bf16.mxu0 %v1948
    %2012 = vmatpush1.bf16.msra.mxu0 %v1947
    %2013 = vmatprep.subr.bf16.mxu0 %v1950
    %2014 = vmatpush1.bf16.msra.mxu0 %v1949
    %2015 = vmatprep.subr.bf16.mxu0 %v1952
    %2016 = vmatpush1.bf16.msra.mxu0 %v1951
    %2017 = vmatprep.subr.bf16.mxu0 %v1954
    %2018 = vmatpush1.bf16.msra.mxu0 %v1953
    %2019 = vmatprep.subr.bf16.mxu0 %v1956
    %2020 = vmatpush1.bf16.msra.mxu0 %v1955
    %2021 = vmatprep.subr.bf16.mxu0 %v1958
    %2022 = vmatpush1.bf16.msra.mxu0 %v1957
    %2023 = vmatprep.subr.bf16.mxu0 %v1960
    %2024 = vmatpush1.bf16.msra.mxu0 %v1959
    %2025 = vmatprep.subr.bf16.mxu0 %v1962
    %2026 = vmatpush1.bf16.msra.mxu0 %v1961
    %2027 = vmatprep.subr.bf16.mxu0 %v1964
    %2028 = vmatpush1.bf16.msra.mxu0 %v1963
    %2029 = vmatprep.subr.bf16.mxu0 %v1966
    %2030 = vmatpush1.bf16.msra.mxu0 %v1965
    %2031 = vmatprep.subr.bf16.mxu0 %v1968
    %2032 = vmatpush1.bf16.msra.mxu0 %v1967
    %2033 = vmatprep.subr.bf16.mxu0 %v1970
    %2034 = vmatpush1.bf16.msra.mxu0 %v1969
    %2035 = vmatprep.subr.bf16.mxu0 %v1972
    %2036 = vmatpush1.bf16.msra.mxu0 %v1971
    %2037 = vmatprep.subr.bf16.mxu0 %v1974
    %2038 = vmatpush1.bf16.msra.mxu0 %v1973
    %2039 = vmatprep.subr.bf16.mxu0 %v1976
    %2040 = vmatpush1.bf16.msra.mxu0 %v1975
    %2041 = vmatprep.subr.bf16.mxu0 %v1978
    %2042 = vmatpush1.bf16.msra.mxu0 %v1977
    %2043 = vmatprep.mubr.bf16.mxu0 %v1818
    %2044 = vmatmul.mubr.bf16.gmra.mrb[0].mxu0 %v1817
    %v2045 = vpop.f32.mrb[0].mxu0
    %v2046 = vadd.f32 0.0, %v2045
    %v2047 = vpop.f32.mrb[0].mxu0
    %v2048 = vadd.f32 0.0, %v2047
    %v2049 = vpop.f32.mrb[0].mxu0
    %v2050 = vadd.f32 0.0, %v2049
    %v2051 = vpop.f32.mrb[0].mxu0
    %v2052 = vadd.f32 0.0, %v2051
    %2053 = vdwg.mxu0
    %v2054 = vpack.c.bf16 %v2050, %v2046
    %v2055 = vpack.c.bf16 %v2052, %v2048
    %v2058 = vunpack.c.l.b16 %v2054
    %v2059 = vunpack.c.l.b16 %v2055
    %v2060 = vunpack.c.h.b16 %v2054
    %v2061 = vunpack.c.h.b16 %v2055
    %v2062 = vpack.c.b16 %v2059, %v2058
    %v2063 = vpack.c.b16 %v2061, %v2060
    %2066 = vst [vmem:[#allocation18] sm:$0xff] %v2062
    %2067 = vst [vmem:[#allocation18 + $0x8] sm:$0xff] %v2063
    // Predicated region
    $region58: #{tpu_custom_call.1} parent=1 // pred_check
      _
    $region59: #{tpu_custom_call.1} parent=1 // pred_check_branch
      %2069 = sbr.rel (0) target = $region61
    $region60: #{tpu_custom_call.1} parent=1 // pred_region
      %s2071 = ssub.s32 256, 256
      %2072 = vsyncadd [#allocation8], %s2071
      %s2073 = sshll.u32 [#allocation18], 4
      %s2074 = int_to_ptr.vmem [resolvable:$true] %s2073
      %2079 = dma.vmem_to_hbm [thread:$0]  %s2074, 256, %s7, [#allocation8], 128, 128, 8
    $region61: #{tpu_custom_call.1} parent=1 // pred_fallthru
      _
    // Predicated region
    $region62: #{tpu_custom_call.1} parent=1 // pred_check
      _
    $region63: #{tpu_custom_call.1} parent=1 // pred_check_branch
      %2081 = sbr.rel (0) target = $region65
    $region64: #{tpu_custom_call.1} parent=1 // pred_region
      %2082 = dma.done [#allocation8], 256
    $region65: #{tpu_custom_call.1} parent=1 // pred_fallthru
      _
    %2083 = vsyncpa [#allocation7], 1
    %2084 = vsyncpa [#allocation10], 1
    %2085 = vsyncpa [#allocation13], 1
    %2086 = vsyncpa [#allocation16], 1
    %2087 = vsyncpa [#allocation8], 1

</llo_original>
